<compile_context>
chip_gen: v5e
topology: v5e:2x2
jax: 0.10.0
libtpu: 0.0.40
codegen_flags: <defaults>
</compile_context>

<pallas_src>
import jax
import jax.numpy as jnp
import numpy as np
from jax.experimental import pallas as pl
from jax.experimental.pallas import tpu as pltpu


def _round_up(x, m):
    return (x + m - 1) // m * m


def _default_vmem_limit_bytes():
    """~75% of per-core VMEM (≈48 MiB on v7x, ≈96 MiB on v5e/v6e)."""
    try:
        info = pltpu.get_tpu_info()
        cap = int(getattr(info, "vmem_capacity_bytes", 0))
        if cap > 0:
            return max(32 * 1024 * 1024, (cap * 3) // 4)
    except Exception:
        pass
    return 48 * 1024 * 1024   # safe on every current generation


# ----------------------------------------------------------------------------
# Pallas kernel: one EGNN layer.  grid = (B, N//TI, N//TJ); j is the reduction.
# ----------------------------------------------------------------------------
def egnn_layer_kernel(
    hi_ref, hj_ref, xi_ref, xj_ref, mi_ref, mj_ref, invn_ref,
    w1a_ref, w1b_ref, b1_ref, w5p_ref,         # edge MLP layer 1 (+ d2 bridge)
    w2_ref, b2_ref,                            # edge MLP layer 2
    wc1_ref, bc1_ref, wc2_ref, bc2_ref,        # coordinate MLP
    wn1_ref, bn1_ref, wn2_ref, bn2_ref,        # node MLP (layer-1 fused)
    h_out_ref, x_out_ref,
    a_sc, m_acc, uxr_acc,
):
    j = pl.program_id(2)
    nj = pl.num_programs(2)

    ti = hi_ref.shape[1]
    tj = hj_ref.shape[1]
    m_dim = w2_ref.shape[0]

    xi = xi_ref[0]                              # (TI, 3) f32
    xj = xj_ref[0]                              # (TJ, 3) f32
    mj = mj_ref[0]                              # (TJ, 1) f32

    # ---- per-(batch, i-tile) init: hoist the node-side matmul, zero accums --
    @pl.when(j == 0)
    def _():
        hi_b = hi_ref[0].astype(jnp.bfloat16)
        a_sc[...] = (jnp.dot(hi_b, w1a_ref[...],
                             preferred_element_type=jnp.float32)
                     + b1_ref[...])             # b1 folded here
        m_acc[...] = jnp.zeros_like(m_acc)
        uxr_acc[...] = jnp.zeros_like(uxr_acc)

    # ---- pairwise squared distances, produced directly in pair-flat layout --
    # F[p=(j,i), :] = [sq_j, 1, -2*x_j] (x) [1, sq_i, x_i]  =>  sum_c F = d2.
    # One K=5 MXU matmul against [w1c | 1] yields both the d2*w1c edge feature
    # and raw d2 in the same layout as the edge-MLP activations, so no
    # cross-lane relayout of d2 is ever needed.
    sq_i = jnp.sum(xi * xi, axis=1, keepdims=True)                       # (TI,1)
    sq_j = jnp.sum(xj * xj, axis=1, keepdims=True)                       # (TJ,1)
    a_aug = jnp.concatenate([sq_j, jnp.ones_like(sq_j), -2.0 * xj], axis=1)
    b_aug = jnp.concatenate([jnp.ones_like(sq_i), sq_i, xi], axis=1)
    f_pair = (a_aug[:, None, :] * b_aug[None, :, :]).reshape(tj * ti, 5)
    fw = jnp.dot(f_pair, w5p_ref[...],
                 preferred_element_type=jnp.float32)                     # (TJ*TI, M+1)
    d2w = fw[:, :m_dim]                                                  # d2 * w1c
    d2 = jnp.maximum(fw[:, m_dim:m_dim + 1], 0.0)                        # (TJ*TI, 1)
    # TODO(synk): if a backward pass is ever added, use sqrt(d2 + eps) below.

    # ---- edge MLP on this (TJ, TI) pair block ------------------------------
    hj_b = hj_ref[0].astype(jnp.bfloat16)
    b_j = jnp.dot(hj_b, w1b_ref[...],
                  preferred_element_type=jnp.float32)                    # (TJ, M)
    pre = (a_sc[...][None, :, :] + b_j[:, None, :]
           + d2w.reshape(tj, ti, m_dim))                                 # (TJ,TI,M)
    e1 = jax.nn.silu(pre).reshape(tj * ti, m_dim).astype(jnp.bfloat16)
    m2d = jax.nn.silu(
        jnp.dot(e1, w2_ref[...], preferred_element_type=jnp.float32)
        + b2_ref[...])                                                   # (TJ*TI, M)

    # ---- node-message accumulation (mask_j only; mask_i applied at finalize)
    m_acc[...] += jnp.sum(m2d.reshape(tj, ti, m_dim) * mj[:, :, None], axis=0)

    # ---- coordinate weights -------------------------------------------------
    c1 = jax.nn.silu(
        jnp.dot(m2d.astype(jnp.bfloat16), wc1_ref[...],
                preferred_element_type=jnp.float32)
        + bc1_ref[...])                                                  # (TJ*TI, 4M)
    wp = jnp.sum(c1 * wc2_ref[...], axis=-1, keepdims=True) + bc2_ref[0, 0]
    u = (wp * pl.reciprocal(jnp.sqrt(d2) + 1.0, approx=True)
         ).reshape(tj, ti, 1)                                            # (TJ,TI,1)

    # coordinate accumulators, node-major: cols 0:3 = sum_j u*x_j, col 3 = sum_j u
    xjm = jnp.concatenate([xj, jnp.ones_like(mj)], axis=1) * mj          # (TJ, 4)
    uxr_acc[...] += jnp.sum(u * xjm[:, None, :], axis=0)                 # (TI, 4)

    # ---- finalize: coordinate + node updates, write the (b, i) output tiles -
    @pl.when(j == nj - 1)
    def _():
        inv_n = invn_ref[0, 0, 0]
        mi = mi_ref[0]                                                   # (TI, 1)
        ux = uxr_acc[:, 0:3]
        ru = uxr_acc[:, 3:4]
        delta = (ru * xi - ux) * inv_n                                   # (TI, 3)
        x_out_ref[0] = (xi + delta * mi).astype(x_out_ref.dtype)

        hi32 = hi_ref[0]
        nm_in = jnp.concatenate(
            [hi32.astype(jnp.bfloat16), m_acc[...].astype(jnp.bfloat16)], axis=1)
        n1 = jax.nn.silu(
            jnp.dot(nm_in, wn1_ref[...], preferred_element_type=jnp.float32)
            + bn1_ref[...])                                              # (TI, 2D)
        dh = (jnp.dot(n1.astype(jnp.bfloat16), wn2_ref[...],
                      preferred_element_type=jnp.float32)
              + bn2_ref[...])                                            # (TI, D)
        h_out_ref[0] = (hi32 + dh * mi).astype(h_out_ref.dtype)


def _full_spec(shape):
    """BlockSpec covering a whole (weight) array; same block at every step."""
    nd = len(shape)
    return pl.BlockSpec(shape, lambda *_: (0,) * nd)


def egnn_layer(h, x, mask, params, *, tile_i=128, tile_j=128,
               vmem_limit_bytes=None):
    """One EGNN layer.  h: (B,N,D) f32, x: (B,N,3) f32, mask: (B,N)."""
    B, N, D = h.shape
    m_dim = params["w2"].shape[0]

    # Tile sizes: multiples of 8; pad N so both tiles divide it (never fall
    # back to a full-N pair block).
    ti = _round_up(min(tile_i, _round_up(N, 8)), 8)
    tj = _round_up(min(tile_j, _round_up(N, 8)), 8)
    n_pad = _round_up(N, int(np.lcm(ti, tj)))

    mask = mask.astype(jnp.float32)
    n_valid = jnp.maximum(jnp.sum(mask, axis=-1) - 1.0, 1.0)
    inv_n = (1.0 / n_valid).reshape(B, 1, 1).astype(jnp.float32)

    if n_pad != N:
        h = jnp.pad(h, ((0, 0), (0, n_pad - N), (0, 0)))
        x = jnp.pad(x, ((0, 0), (0, n_pad - N), (0, 0)))
        mask = jnp.pad(mask, ((0, 0), (0, n_pad - N)))
    mask_col = mask[:, :, None]

    ni, nj = n_pad // ti, n_pad // tj

    bf16 = jnp.bfloat16
    # d2-bridge weight: F @ [w1c-broadcast | 1] == [d2 * w1c | d2].
    w5p = jnp.concatenate(
        [jnp.broadcast_to(params["w1c"], (5, m_dim)),
         jnp.ones((5, 1), jnp.float32)], axis=1)
    # fused node-MLP layer-1 weight: [h_i | m_i] @ [wn1h ; wn1m].
    wn1 = jnp.concatenate([params["wn1h"], params["wn1m"]], axis=0)
    weights = [
        params["w1a"].astype(bf16), params["w1b"].astype(bf16),
        params["b1"], w5p,
        params["w2"].astype(bf16), params["b2"],
        params["wc1"].astype(bf16), params["bc1"],
        params["wc2"], params["bc2"],
        wn1.astype(bf16), params["bn1"],
        params["wn2"].astype(bf16), params["bn2"],
    ]

    in_specs = [
        pl.BlockSpec((1, ti, D), lambda b, i, j: (b, i, 0)),   # h_i (node tile)
        pl.BlockSpec((1, tj, D), lambda b, i, j: (b, j, 0)),   # h_j
        pl.BlockSpec((1, ti, 3), lambda b, i, j: (b, i, 0)),   # x_i
        pl.BlockSpec((1, tj, 3), lambda b, i, j: (b, j, 0)),   # x_j
        pl.BlockSpec((1, ti, 1), lambda b, i, j: (b, i, 0)),   # mask_i column
        pl.BlockSpec((1, tj, 1), lambda b, i, j: (b, j, 0)),   # mask_j column
        pl.BlockSpec((1, 1, 1), lambda b, i, j: (b, 0, 0)),    # 1 / n_valid
    ] + [_full_spec(w.shape) for w in weights]

    out_specs = [
        pl.BlockSpec((1, ti, D), lambda b, i, j: (b, i, 0)),
        pl.BlockSpec((1, ti, 3), lambda b, i, j: (b, i, 0)),
    ]

    if vmem_limit_bytes is None:
        vmem_limit_bytes = _default_vmem_limit_bytes()

    h_out, x_out = pl.pallas_call(
        egnn_layer_kernel,
        out_shape=(jax.ShapeDtypeStruct((B, n_pad, D), jnp.float32),
                   jax.ShapeDtypeStruct((B, n_pad, 3), jnp.float32)),
        grid_spec=pltpu.PrefetchScalarGridSpec(
            num_scalar_prefetch=0,
            grid=(B, ni, nj),
            in_specs=in_specs,
            out_specs=out_specs,
            scratch_shapes=[
                pltpu.VMEM((ti, m_dim), jnp.float32),   # a_i = h_i @ w1a + b1
                pltpu.VMEM((ti, m_dim), jnp.float32),   # sum_j m_ij
                pltpu.VMEM((ti, 4), jnp.float32),       # [sum_j u*x_j | sum_j u]
            ]),
        compiler_params=pltpu.CompilerParams(
            dimension_semantics=("parallel", "parallel", "arbitrary"),
            vmem_limit_bytes=int(vmem_limit_bytes)),
    )(h, h, x, x, mask_col, mask_col, inv_n, *weights)

    if n_pad != N:
        h_out = h_out[:, :N, :]
        x_out = x_out[:, :N, :]
    return h_out, x_out


# ----------------------------------------------------------------------------
# Deterministic synthetic "egnn_model" parameters
# ----------------------------------------------------------------------------
def make_layer_params(key, dim, m_dim):
    ks = jax.random.split(key, 9)

    def lin(k, i, o, scale=1.0):
        return jax.random.normal(k, (i, o), jnp.float32) * (scale / np.sqrt(i))

    return dict(
        w1a=lin(ks[0], dim, m_dim),
        w1b=lin(ks[1], dim, m_dim),
        w1c=jax.random.normal(ks[2], (1, m_dim), jnp.float32) * 0.1,
        b1=jnp.zeros((1, m_dim), jnp.float32),
        w2=lin(ks[3], m_dim, m_dim),
        b2=jnp.zeros((1, m_dim), jnp.float32),
        wc1=lin(ks[4], m_dim, 4 * m_dim),
        bc1=jnp.zeros((1, 4 * m_dim), jnp.float32),
        # wc2 kept as a lane-dense row (contracted on the VPU inside the kernel)
        wc2=(jax.random.normal(ks[5], (1, 4 * m_dim), jnp.float32)
             * (0.01 / np.sqrt(4 * m_dim))),
        bc2=jnp.zeros((1, 1), jnp.float32),
        wn1h=lin(ks[6], dim, 2 * dim),
        wn1m=lin(ks[7], m_dim, 2 * dim),
        bn1=jnp.zeros((1, 2 * dim), jnp.float32),
        wn2=lin(ks[8], 2 * dim, dim),
        bn2=jnp.zeros((1, dim), jnp.float32),
    )


# ----------------------------------------------------------------------------
# Encoder: tokenizer + coord padding (glue) + Pallas EGNN layers (hot path)
# ----------------------------------------------------------------------------
_AA_VOCAB = "ACDEFGHIKLMNPQRSTVWY"  # pad=0, unk=21


class ProteinEgnnEncoderPallas:
    def __init__(self, key, *, max_seq_length=12, dim=32, m_dim=32, depth=2,
                 num_tokens=24, tile_i=128, tile_j=128):
        # The torch module advertises hidden_size=512; this synthetic instance
        # uses dim=32 for a small, fast test (same math, smaller widths).
        self.max_seq_length = max_seq_length
        self.dim = dim
        self.depth = depth
        self.tile_i = tile_i
        self.tile_j = tile_j
        k_emb, *k_layers = jax.random.split(key, depth + 1)
        self.embedding = (jax.random.normal(
            k_emb, (num_tokens, dim), jnp.float32) * 0.02)
        self.layer_params = [make_layer_params(k, dim, m_dim) for k in k_layers]

    # Minimal EnzymeTokenizer stand-in: char -> id, pad/truncate to max_seq_length.
    # TODO(synk): the real EnzymeTokenizer (special tokens / vocab) is external
    # to the module; a deterministic char-level tokenizer is used instead.
    def tokenize(self, batch_seqs):
        L = self.max_seq_length
        ids, masks = [], []
        for seq in batch_seqs:
            tok = [(_AA_VOCAB.index(c) + 1) if c in _AA_VOCAB else 21
                   for c in seq][:L]
            m = [1.0] * len(tok)
            tok = tok + [0] * (L - len(tok))
            m = m + [0.0] * (L - len(m))
            ids.append(tok)
            masks.append(m)
        return np.asarray(ids, np.int32), np.asarray(masks, np.float32)

    def forward(self, batch_seqs, batch_coords):
        input_ids, masks = self.tokenize(batch_seqs)
        max_len = input_ids.shape[1]

        # pad / truncate coordinates exactly like the torch forward
        padded_coords = []
        for coords in batch_coords:
            coords = [c[1] for c in coords]
            if len(coords) > max_len:
                coords = coords[:max_len]
            elif len(coords) < max_len:
                coords = coords + [[0.0, 0.0, 0.0]] * (max_len - len(coords))
            padded_coords.append(coords)
        coords = jnp.asarray(np.asarray(padded_coords, np.float32))      # (B,N,3)

        feats = jnp.asarray(input_ids)                                   # (B,N)
        mask = jnp.asarray(masks)                                        # (B,N)

        h = self.embedding[feats]                                        # (B,N,D)
        x = coords                                                       # (B,N,3)
        for p in self.layer_params:
            h, x = egnn_layer(h, x, mask, p,
                              tile_i=self.tile_i, tile_j=self.tile_j)
        return h                                                         # == egnn(...)[0]


# ----------------------------------------------------------------------------
if __name__ == "__main__":
    key = jax.random.PRNGKey(0)
    k_model, k_c0, k_c1 = jax.random.split(key, 3)

    # tile_i = tile_j = 8 with max_seq_length = 12 (padded to 16 inside the
    # wrapper) -> grid (B, 2, 2): exercises the i-tiling, the streamed-j
    # accumulators and the N-padding path.  At realistic N use 128 / 128.
    encoder = ProteinEgnnEncoderPallas(k_model, max_seq_length=12, dim=32,
                                       m_dim=32, depth=2, tile_i=8, tile_j=8)

    batch_seqs = ["MKTAYIAK", "GAVLIMCFYWH"]

    # batch_coords format matches the torch module: (name, [x, y, z]) per residue
    def make_coords(k, n):
        c = jax.random.normal(k, (n, 3), jnp.float32)
        return [("CA", [float(v) for v in c[i]]) for i in range(n)]

    batch_coords = [make_coords(k_c0, len(batch_seqs[0])),
                    make_coords(k_c1, len(batch_seqs[1]))]

    h = encoder.forward(batch_seqs, batch_coords)
    h = jax.block_until_ready(h)
    assert h.shape == (2, 12, 32) and h.dtype == jnp.float32
    assert bool(jnp.all(jnp.isfinite(h)))
    print("KERNEL_OK")
</pallas_src>

<mosaic_0001>
module attributes {stable_mosaic.version = 11 : i64} {
  func.func @egnn_layer_kernel(%arg0: i32, %arg1: i32, %arg2: i32, %arg3: memref<1x8x32xf32, #tpu.memory_space<vmem>>, %arg4: memref<1x8x32xf32, #tpu.memory_space<vmem>>, %arg5: memref<1x8x3xf32, #tpu.memory_space<vmem>>, %arg6: memref<1x8x3xf32, #tpu.memory_space<vmem>>, %arg7: memref<1x8x1xf32, #tpu.memory_space<vmem>>, %arg8: memref<1x8x1xf32, #tpu.memory_space<vmem>>, %arg9: memref<1x1x1xf32, #tpu.memory_space<vmem>>, %arg10: memref<32x32xbf16, #tpu.memory_space<vmem>>, %arg11: memref<32x32xbf16, #tpu.memory_space<vmem>>, %arg12: memref<1x32xf32, #tpu.memory_space<vmem>>, %arg13: memref<5x33xf32, #tpu.memory_space<vmem>>, %arg14: memref<32x32xbf16, #tpu.memory_space<vmem>>, %arg15: memref<1x32xf32, #tpu.memory_space<vmem>>, %arg16: memref<32x128xbf16, #tpu.memory_space<vmem>>, %arg17: memref<1x128xf32, #tpu.memory_space<vmem>>, %arg18: memref<1x128xf32, #tpu.memory_space<vmem>>, %arg19: memref<1x1xf32, #tpu.memory_space<vmem>>, %arg20: memref<64x64xbf16, #tpu.memory_space<vmem>>, %arg21: memref<1x64xf32, #tpu.memory_space<vmem>>, %arg22: memref<64x32xbf16, #tpu.memory_space<vmem>>, %arg23: memref<1x32xf32, #tpu.memory_space<vmem>>, %arg24: memref<1x8x32xf32, #tpu.memory_space<vmem>>, %arg25: memref<1x8x3xf32, #tpu.memory_space<vmem>>, %arg26: memref<8x32xf32, #tpu.memory_space<vmem>>, %arg27: memref<8x32xf32, #tpu.memory_space<vmem>>, %arg28: memref<8x4xf32, #tpu.memory_space<vmem>>) attributes {dimension_semantics = [#tpu.dimension_semantics<parallel>, #tpu.dimension_semantics<parallel>, #tpu.dimension_semantics<arbitrary>], iteration_bounds = array<i64: 2, 2, 2>, scalar_prefetch = 0 : i64, scratch_operands = 3 : i64, tpu.core_type = #tpu.core_type<tc>, window_params = [{transform_indices = @transform_0, window_bounds = array<i64: 1, 8, 32>}, {transform_indices = @transform_1, window_bounds = array<i64: 1, 8, 32>}, {transform_indices = @transform_2, window_bounds = array<i64: 1, 8, 3>}, {transform_indices = @transform_3, window_bounds = array<i64: 1, 8, 3>}, {transform_indices = @transform_4, window_bounds = array<i64: 1, 8, 1>}, {transform_indices = @transform_5, window_bounds = array<i64: 1, 8, 1>}, {transform_indices = @transform_6, window_bounds = array<i64: 1, 1, 1>}, {pipeline_mode = #tpu.pipeline_mode<synchronous>, transform_indices = @transform_7, window_bounds = array<i64: 32, 32>}, {pipeline_mode = #tpu.pipeline_mode<synchronous>, transform_indices = @transform_8, window_bounds = array<i64: 32, 32>}, {pipeline_mode = #tpu.pipeline_mode<synchronous>, transform_indices = @transform_9, window_bounds = array<i64: 1, 32>}, {pipeline_mode = #tpu.pipeline_mode<synchronous>, transform_indices = @transform_10, window_bounds = array<i64: 5, 33>}, {pipeline_mode = #tpu.pipeline_mode<synchronous>, transform_indices = @transform_11, window_bounds = array<i64: 32, 32>}, {pipeline_mode = #tpu.pipeline_mode<synchronous>, transform_indices = @transform_12, window_bounds = array<i64: 1, 32>}, {pipeline_mode = #tpu.pipeline_mode<synchronous>, transform_indices = @transform_13, window_bounds = array<i64: 32, 128>}, {pipeline_mode = #tpu.pipeline_mode<synchronous>, transform_indices = @transform_14, window_bounds = array<i64: 1, 128>}, {pipeline_mode = #tpu.pipeline_mode<synchronous>, transform_indices = @transform_15, window_bounds = array<i64: 1, 128>}, {pipeline_mode = #tpu.pipeline_mode<synchronous>, transform_indices = @transform_16, window_bounds = array<i64: 1, 1>}, {pipeline_mode = #tpu.pipeline_mode<synchronous>, transform_indices = @transform_17, window_bounds = array<i64: 64, 64>}, {pipeline_mode = #tpu.pipeline_mode<synchronous>, transform_indices = @transform_18, window_bounds = array<i64: 1, 64>}, {pipeline_mode = #tpu.pipeline_mode<synchronous>, transform_indices = @transform_19, window_bounds = array<i64: 64, 32>}, {pipeline_mode = #tpu.pipeline_mode<synchronous>, transform_indices = @transform_20, window_bounds = array<i64: 1, 32>}, {transform_indices = @transform_21, window_bounds = array<i64: 1, 8, 32>}, {transform_indices = @transform_22, window_bounds = array<i64: 1, 8, 3>}]} {
    %c0 = arith.constant 0 : index
    %c0_0 = arith.constant 0 : index
    %c0_1 = arith.constant 0 : index
    %0 = vector.load %arg5[%c0, %c0_0, %c0_1] : memref<1x8x3xf32, #tpu.memory_space<vmem>>, vector<1x8x3xf32>
    %1 = vector.shape_cast %0 : vector<1x8x3xf32> to vector<8x3xf32>
    %c0_2 = arith.constant 0 : index
    %c0_3 = arith.constant 0 : index
    %c0_4 = arith.constant 0 : index
    %2 = vector.load %arg6[%c0_2, %c0_3, %c0_4] : memref<1x8x3xf32, #tpu.memory_space<vmem>>, vector<1x8x3xf32>
    %3 = vector.shape_cast %2 : vector<1x8x3xf32> to vector<8x3xf32>
    %c0_5 = arith.constant 0 : index
    %c0_6 = arith.constant 0 : index
    %c0_7 = arith.constant 0 : index
    %4 = vector.load %arg8[%c0_5, %c0_6, %c0_7] : memref<1x8x1xf32, #tpu.memory_space<vmem>>, vector<1x8x1xf32>
    %5 = vector.shape_cast %4 : vector<1x8x1xf32> to vector<8x1xf32>
    %c0_i32 = arith.constant 0 : i32
    %6 = arith.cmpi eq, %arg2, %c0_i32 : i32
    %7 = arith.extui %6 : i1 to i32
    %c0_i32_8 = arith.constant 0 : i32
    %8 = arith.cmpi ne, %7, %c0_i32_8 : i32
    scf.if %8 {
      %c0_56 = arith.constant 0 : index
      %c0_57 = arith.constant 0 : index
      %c0_58 = arith.constant 0 : index
      %115 = vector.load %arg3[%c0_56, %c0_57, %c0_58] : memref<1x8x32xf32, #tpu.memory_space<vmem>>, vector<1x8x32xf32>
      %116 = vector.shape_cast %115 : vector<1x8x32xf32> to vector<8x32xf32>
      %117 = arith.truncf %116 : vector<8x32xf32> to vector<8x32xbf16>
      %c0_59 = arith.constant 0 : index
      %c0_60 = arith.constant 0 : index
      %118 = vector.load %arg10[%c0_59, %c0_60] : memref<32x32xbf16, #tpu.memory_space<vmem>>, vector<32x32xbf16>
      %cst_61 = arith.constant dense<0.000000e+00> : vector<8x32xf32>
      %119 = tpu.matmul %117, %118, %cst_61 {dimension_numbers = #tpu.dot_dimension_numbers<[1], [0], [0], [1], [0, 0, 1, 1], [], []>} : vector<8x32xbf16>, vector<32x32xbf16>, vector<8x32xf32> -> vector<8x32xf32>
      %c0_62 = arith.constant 0 : index
      %c0_63 = arith.constant 0 : index
      %120 = vector.load %arg12[%c0_62, %c0_63] : memref<1x32xf32, #tpu.memory_space<vmem>>, vector<1x32xf32>
      %121 = vector.broadcast %120 : vector<1x32xf32> to vector<8x32xf32>
      %122 = arith.addf %119, %121 : vector<8x32xf32>
      %c0_64 = arith.constant 0 : index
      %c0_65 = arith.constant 0 : index
      %123 = vector.load %arg26[%c0_64, %c0_65] : memref<8x32xf32, #tpu.memory_space<vmem>>, vector<8x32xf32>
      tpu.vector_store %arg26[%c0_64, %c0_65], %122 {strides = array<i32>} : memref<8x32xf32, #tpu.memory_space<vmem>>, vector<8x32xf32>,
      %cst_66 = arith.constant 0.000000e+00 : f32
      %124 = vector.broadcast %cst_66 : f32 to vector<8x32xf32>
      %c0_67 = arith.constant 0 : index
      %c0_68 = arith.constant 0 : index
      %125 = vector.load %arg27[%c0_67, %c0_68] : memref<8x32xf32, #tpu.memory_space<vmem>>, vector<8x32xf32>
      tpu.vector_store %arg27[%c0_67, %c0_68], %124 {strides = array<i32>} : memref<8x32xf32, #tpu.memory_space<vmem>>, vector<8x32xf32>,
      %cst_69 = arith.constant 0.000000e+00 : f32
      %126 = vector.broadcast %cst_69 : f32 to vector<8x4xf32>
      %c0_70 = arith.constant 0 : index
      %c0_71 = arith.constant 0 : index
      %127 = vector.load %arg28[%c0_70, %c0_71] : memref<8x4xf32, #tpu.memory_space<vmem>>, vector<8x4xf32>
      tpu.vector_store %arg28[%c0_70, %c0_71], %126 {strides = array<i32>} : memref<8x4xf32, #tpu.memory_space<vmem>>, vector<8x4xf32>,
    } else {
    }
    %9 = arith.mulf %1, %1 : vector<8x3xf32>
    %cst = arith.constant dense<0.000000e+00> : vector<8xf32>
    %10 = vector.multi_reduction <add>, %9, %cst [1] : vector<8x3xf32> to vector<8xf32>
    %11 = vector.shape_cast %10 : vector<8xf32> to vector<8x1xf32>
    %12 = arith.mulf %3, %3 : vector<8x3xf32>
    %cst_9 = arith.constant dense<0.000000e+00> : vector<8xf32>
    %13 = vector.multi_reduction <add>, %12, %cst_9 [1] : vector<8x3xf32> to vector<8xf32>
    %14 = vector.shape_cast %13 : vector<8xf32> to vector<8x1xf32>
    %cst_10 = arith.constant 1.000000e+00 : f32
    %15 = vector.broadcast %cst_10 : f32 to vector<8x1xf32>
    %cst_11 = arith.constant -2.000000e+00 : f32
    %16 = vector.broadcast %cst_11 : f32 to vector<8x3xf32>
    %17 = arith.mulf %16, %3 : vector<8x3xf32>
    %18 = tpu.concatenate %14, %15, %17 in 1 : vector<8x1xf32>, vector<8x1xf32>, vector<8x3xf32> -> vector<8x5xf32>
    %cst_12 = arith.constant 1.000000e+00 : f32
    %19 = vector.broadcast %cst_12 : f32 to vector<8x1xf32>
    %20 = tpu.concatenate %19, %11, %1 in 1 : vector<8x1xf32>, vector<8x1xf32>, vector<8x3xf32> -> vector<8x5xf32>
    %21 = vector.shape_cast %18 : vector<8x5xf32> to vector<8x1x5xf32>
    %22 = vector.shape_cast %20 : vector<8x5xf32> to vector<1x8x5xf32>
    %23 = vector.broadcast %21 : vector<8x1x5xf32> to vector<8x8x5xf32>
    %24 = vector.broadcast %22 : vector<1x8x5xf32> to vector<8x8x5xf32>
    %25 = arith.mulf %23, %24 : vector<8x8x5xf32>
    %26 = vector.shape_cast %25 : vector<8x8x5xf32> to vector<64x5xf32>
    %c0_13 = arith.constant 0 : index
    %c0_14 = arith.constant 0 : index
    %27 = vector.load %arg13[%c0_13, %c0_14] : memref<5x33xf32, #tpu.memory_space<vmem>>, vector<5x33xf32>
    %cst_15 = arith.constant dense<0.000000e+00> : vector<64x33xf32>
    %28 = tpu.matmul %26, %27, %cst_15 {dimension_numbers = #tpu.dot_dimension_numbers<[1], [0], [0], [1], [0, 0, 1, 1], [], []>} : vector<64x5xf32>, vector<5x33xf32>, vector<64x33xf32> -> vector<64x33xf32>
    %29 = vector.extract_strided_slice %28 {offsets = [0, 0], sizes = [64, 32], strides = [1, 1]} : vector<64x33xf32> to vector<64x32xf32>
    %30 = vector.extract_strided_slice %28 {offsets = [0, 32], sizes = [64, 1], strides = [1, 1]} : vector<64x33xf32> to vector<64x1xf32>
    %cst_16 = arith.constant 0.000000e+00 : f32
    %31 = vector.broadcast %cst_16 : f32 to vector<64x1xf32>
    %32 = arith.maximumf %30, %31 : vector<64x1xf32>
    %c0_17 = arith.constant 0 : index
    %c0_18 = arith.constant 0 : index
    %c0_19 = arith.constant 0 : index
    %33 = vector.load %arg4[%c0_17, %c0_18, %c0_19] : memref<1x8x32xf32, #tpu.memory_space<vmem>>, vector<1x8x32xf32>
    %34 = vector.shape_cast %33 : vector<1x8x32xf32> to vector<8x32xf32>
    %35 = arith.truncf %34 : vector<8x32xf32> to vector<8x32xbf16>
    %c0_20 = arith.constant 0 : index
    %c0_21 = arith.constant 0 : index
    %36 = vector.load %arg11[%c0_20, %c0_21] : memref<32x32xbf16, #tpu.memory_space<vmem>>, vector<32x32xbf16>
    %cst_22 = arith.constant dense<0.000000e+00> : vector<8x32xf32>
    %37 = tpu.matmul %35, %36, %cst_22 {dimension_numbers = #tpu.dot_dimension_numbers<[1], [0], [0], [1], [0, 0, 1, 1], [], []>} : vector<8x32xbf16>, vector<32x32xbf16>, vector<8x32xf32> -> vector<8x32xf32>
    %c0_23 = arith.constant 0 : index
    %c0_24 = arith.constant 0 : index
    %38 = vector.load %arg26[%c0_23, %c0_24] : memref<8x32xf32, #tpu.memory_space<vmem>>, vector<8x32xf32>
    %39 = vector.shape_cast %38 : vector<8x32xf32> to vector<1x8x32xf32>
    %40 = vector.shape_cast %37 : vector<8x32xf32> to vector<8x1x32xf32>
    %41 = vector.broadcast %39 : vector<1x8x32xf32> to vector<8x8x32xf32>
    %42 = vector.broadcast %40 : vector<8x1x32xf32> to vector<8x8x32xf32>
    %43 = arith.addf %41, %42 : vector<8x8x32xf32>
    %44 = vector.shape_cast %29 : vector<64x32xf32> to vector<8x8x32xf32>
    %45 = arith.addf %43, %44 : vector<8x8x32xf32>
    %46 = arith.negf %45 : vector<8x8x32xf32>
    %47 = math.exp %46 : vector<8x8x32xf32>
    %cst_25 = arith.constant 1.000000e+00 : f32
    %48 = vector.broadcast %cst_25 : f32 to vector<8x8x32xf32>
    %49 = arith.addf %48, %47 : vector<8x8x32xf32>
    %50 = arith.divf %48, %49 : vector<8x8x32xf32>
    %51 = arith.mulf %45, %50 : vector<8x8x32xf32>
    %52 = vector.shape_cast %51 : vector<8x8x32xf32> to vector<64x32xf32>
    %53 = arith.truncf %52 : vector<64x32xf32> to vector<64x32xbf16>
    %c0_26 = arith.constant 0 : index
    %c0_27 = arith.constant 0 : index
    %54 = vector.load %arg14[%c0_26, %c0_27] : memref<32x32xbf16, #tpu.memory_space<vmem>>, vector<32x32xbf16>
    %cst_28 = arith.constant dense<0.000000e+00> : vector<64x32xf32>
    %55 = tpu.matmul %53, %54, %cst_28 {dimension_numbers = #tpu.dot_dimension_numbers<[1], [0], [0], [1], [0, 0, 1, 1], [], []>} : vector<64x32xbf16>, vector<32x32xbf16>, vector<64x32xf32> -> vector<64x32xf32>
    %c0_29 = arith.constant 0 : index
    %c0_30 = arith.constant 0 : index
    %56 = vector.load %arg15[%c0_29, %c0_30] : memref<1x32xf32, #tpu.memory_space<vmem>>, vector<1x32xf32>
    %57 = vector.broadcast %56 : vector<1x32xf32> to vector<64x32xf32>
    %58 = arith.addf %55, %57 : vector<64x32xf32>
    %59 = arith.negf %58 : vector<64x32xf32>
    %60 = math.exp %59 : vector<64x32xf32>
    %cst_31 = arith.constant 1.000000e+00 : f32
    %61 = vector.broadcast %cst_31 : f32 to vector<64x32xf32>
    %62 = arith.addf %61, %60 : vector<64x32xf32>
    %63 = arith.divf %61, %62 : vector<64x32xf32>
    %64 = arith.mulf %58, %63 : vector<64x32xf32>
    %c0_32 = arith.constant 0 : index
    %c0_33 = arith.constant 0 : index
    %65 = vector.load %arg27[%c0_32, %c0_33] : memref<8x32xf32, #tpu.memory_space<vmem>>, vector<8x32xf32>
    %66 = vector.shape_cast %64 : vector<64x32xf32> to vector<8x8x32xf32>
    %67 = vector.shape_cast %5 : vector<8x1xf32> to vector<8x1x1xf32>
    %68 = vector.broadcast %67 : vector<8x1x1xf32> to vector<8x8x32xf32>
    %69 = arith.mulf %66, %68 : vector<8x8x32xf32>
    %cst_34 = arith.constant dense<0.000000e+00> : vector<8x32xf32>
    %70 = vector.multi_reduction <add>, %69, %cst_34 [0] : vector<8x8x32xf32> to vector<8x32xf32>
    %71 = arith.addf %65, %70 : vector<8x32xf32>
    %c0_35 = arith.constant 0 : index
    %c0_36 = arith.constant 0 : index
    %72 = vector.load %arg27[%c0_35, %c0_36] : memref<8x32xf32, #tpu.memory_space<vmem>>, vector<8x32xf32>
    tpu.vector_store %arg27[%c0_35, %c0_36], %71 {strides = array<i32>} : memref<8x32xf32, #tpu.memory_space<vmem>>, vector<8x32xf32>,
    %73 = arith.truncf %64 : vector<64x32xf32> to vector<64x32xbf16>
    %c0_37 = arith.constant 0 : index
    %c0_38 = arith.constant 0 : index
    %74 = vector.load %arg16[%c0_37, %c0_38] : memref<32x128xbf16, #tpu.memory_space<vmem>>, vector<32x128xbf16>
    %cst_39 = arith.constant dense<0.000000e+00> : vector<64x128xf32>
    %75 = tpu.matmul %73, %74, %cst_39 {dimension_numbers = #tpu.dot_dimension_numbers<[1], [0], [0], [1], [0, 0, 1, 1], [], []>} : vector<64x32xbf16>, vector<32x128xbf16>, vector<64x128xf32> -> vector<64x128xf32>
    %c0_40 = arith.constant 0 : index
    %c0_41 = arith.constant 0 : index
    %76 = vector.load %arg17[%c0_40, %c0_41] : memref<1x128xf32, #tpu.memory_space<vmem>>, vector<1x128xf32>
    %77 = vector.broadcast %76 : vector<1x128xf32> to vector<64x128xf32>
    %78 = arith.addf %75, %77 : vector<64x128xf32>
    %79 = arith.negf %78 : vector<64x128xf32>
    %80 = math.exp %79 : vector<64x128xf32>
    %cst_42 = arith.constant 1.000000e+00 : f32
    %81 = vector.broadcast %cst_42 : f32 to vector<64x128xf32>
    %82 = arith.addf %81, %80 : vector<64x128xf32>
    %83 = arith.divf %81, %82 : vector<64x128xf32>
    %84 = arith.mulf %78, %83 : vector<64x128xf32>
    %c0_43 = arith.constant 0 : index
    %c0_44 = arith.constant 0 : index
    %85 = vector.load %arg18[%c0_43, %c0_44] : memref<1x128xf32, #tpu.memory_space<vmem>>, vector<1x128xf32>
    %86 = vector.broadcast %85 : vector<1x128xf32> to vector<64x128xf32>
    %87 = arith.mulf %84, %86 : vector<64x128xf32>
    %cst_45 = arith.constant dense<0.000000e+00> : vector<64xf32>
    %88 = vector.multi_reduction <add>, %87, %cst_45 [1] : vector<64x128xf32> to vector<64xf32>
    %89 = vector.shape_cast %88 : vector<64xf32> to vector<64x1xf32>
    %c0_46 = arith.constant 0 : index
    %c0_47 = arith.constant 0 : index
    %90 = vector.load %arg19[%c0_46, %c0_47] : memref<1x1xf32, #tpu.memory_space<vmem>>, vector<1x1xf32>
    %91 = vector.extract %90[0, 0] : f32 from vector<1x1xf32>
    %92 = vector.broadcast %91 : f32 to vector<64x1xf32>
    %93 = arith.addf %89, %92 : vector<64x1xf32>
    %94 = math.sqrt %32 : vector<64x1xf32>
    %cst_48 = arith.constant 1.000000e+00 : f32
    %95 = vector.broadcast %cst_48 : f32 to vector<64x1xf32>
    %96 = arith.addf %94, %95 : vector<64x1xf32>
    %97 = tpu.reciprocal %96 {approx = true} : vector<64x1xf32> -> vector<64x1xf32>
    %98 = arith.mulf %93, %97 : vector<64x1xf32>
    %99 = vector.shape_cast %98 : vector<64x1xf32> to vector<8x8x1xf32>
    %cst_49 = arith.constant 1.000000e+00 : f32
    %100 = vector.broadcast %cst_49 : f32 to vector<8x1xf32>
    %101 = tpu.concatenate %3, %100 in 1 : vector<8x3xf32>, vector<8x1xf32> -> vector<8x4xf32>
    %102 = vector.broadcast %5 : vector<8x1xf32> to vector<8x4xf32>
    %103 = arith.mulf %101, %102 : vector<8x4xf32>
    %c0_50 = arith.constant 0 : index
    %c0_51 = arith.constant 0 : index
    %104 = vector.load %arg28[%c0_50, %c0_51] : memref<8x4xf32, #tpu.memory_space<vmem>>, vector<8x4xf32>
    %105 = vector.shape_cast %103 : vector<8x4xf32> to vector<8x1x4xf32>
    %106 = vector.broadcast %99 : vector<8x8x1xf32> to vector<8x8x4xf32>
    %107 = vector.broadcast %105 : vector<8x1x4xf32> to vector<8x8x4xf32>
    %108 = arith.mulf %106, %107 : vector<8x8x4xf32>
    %cst_52 = arith.constant dense<0.000000e+00> : vector<8x4xf32>
    %109 = vector.multi_reduction <add>, %108, %cst_52 [0] : vector<8x8x4xf32> to vector<8x4xf32>
    %110 = arith.addf %104, %109 : vector<8x4xf32>
    %c0_53 = arith.constant 0 : index
    %c0_54 = arith.constant 0 : index
    %111 = vector.load %arg28[%c0_53, %c0_54] : memref<8x4xf32, #tpu.memory_space<vmem>>, vector<8x4xf32>
    tpu.vector_store %arg28[%c0_53, %c0_54], %110 {strides = array<i32>} : memref<8x4xf32, #tpu.memory_space<vmem>>, vector<8x4xf32>,
    %c1_i32 = arith.constant 1 : i32
    %112 = arith.cmpi eq, %arg2, %c1_i32 : i32
    %113 = arith.extui %112 : i1 to i32
    %c0_i32_55 = arith.constant 0 : i32
    %114 = arith.cmpi ne, %113, %c0_i32_55 : i32
    scf.if %114 {
      %c0_56 = arith.constant 0 : index
      %c0_57 = arith.constant 0 : index
      %c0_58 = arith.constant 0 : index
      %115 = vector.load %arg9[%c0_56, %c0_57, %c0_58] : memref<1x1x1xf32, #tpu.memory_space<vmem>>, vector<1x1x1xf32>
      %116 = vector.extract %115[0, 0, 0] : f32 from vector<1x1x1xf32>
      %c0_59 = arith.constant 0 : index
      %c0_60 = arith.constant 0 : index
      %c0_61 = arith.constant 0 : index
      %117 = vector.load %arg7[%c0_59, %c0_60, %c0_61] : memref<1x8x1xf32, #tpu.memory_space<vmem>>, vector<1x8x1xf32>
      %118 = vector.shape_cast %117 : vector<1x8x1xf32> to vector<8x1xf32>
      %c0_62 = arith.constant 0 : index
      %c0_63 = arith.constant 0 : index
      %119 = vector.load %arg28[%c0_62, %c0_63] : memref<8x4xf32, #tpu.memory_space<vmem>>, vector<8x3xf32>
      %c0_64 = arith.constant 0 : index
      %c3 = arith.constant 3 : index
      %120 = vector.load %arg28[%c0_64, %c3] : memref<8x4xf32, #tpu.memory_space<vmem>>, vector<8x1xf32>
      %121 = vector.broadcast %120 : vector<8x1xf32> to vector<8x3xf32>
      %122 = arith.mulf %121, %1 : vector<8x3xf32>
      %123 = arith.subf %122, %119 : vector<8x3xf32>
      %124 = vector.broadcast %116 : f32 to vector<8x3xf32>
      %125 = arith.mulf %123, %124 : vector<8x3xf32>
      %126 = vector.broadcast %118 : vector<8x1xf32> to vector<8x3xf32>
      %127 = arith.mulf %125, %126 : vector<8x3xf32>
      %128 = arith.addf %1, %127 : vector<8x3xf32>
      %c0_65 = arith.constant 0 : index
      %c0_66 = arith.constant 0 : index
      %c0_67 = arith.constant 0 : index
      %129 = vector.load %arg25[%c0_65, %c0_66, %c0_67] : memref<1x8x3xf32, #tpu.memory_space<vmem>>, vector<1x8x3xf32>
      %130 = vector.shape_cast %129 : vector<1x8x3xf32> to vector<8x3xf32>
      %131 = vector.shape_cast %128 : vector<8x3xf32> to vector<1x8x3xf32>
      tpu.vector_store %arg25[%c0_65, %c0_66, %c0_67], %131 {strides = array<i32>} : memref<1x8x3xf32, #tpu.memory_space<vmem>>, vector<1x8x3xf32>,
      %c0_68 = arith.constant 0 : index
      %c0_69 = arith.constant 0 : index
      %c0_70 = arith.constant 0 : index
      %132 = vector.load %arg3[%c0_68, %c0_69, %c0_70] : memref<1x8x32xf32, #tpu.memory_space<vmem>>, vector<1x8x32xf32>
      %133 = vector.shape_cast %132 : vector<1x8x32xf32> to vector<8x32xf32>
      %134 = arith.truncf %133 : vector<8x32xf32> to vector<8x32xbf16>
      %c0_71 = arith.constant 0 : index
      %c0_72 = arith.constant 0 : index
      %135 = vector.load %arg27[%c0_71, %c0_72] : memref<8x32xf32, #tpu.memory_space<vmem>>, vector<8x32xf32>
      %136 = arith.truncf %135 : vector<8x32xf32> to vector<8x32xbf16>
      %137 = tpu.concatenate %134, %136 in 1 : vector<8x32xbf16>, vector<8x32xbf16> -> vector<8x64xbf16>
      %c0_73 = arith.constant 0 : index
      %c0_74 = arith.constant 0 : index
      %138 = vector.load %arg20[%c0_73, %c0_74] : memref<64x64xbf16, #tpu.memory_space<vmem>>, vector<64x64xbf16>
      %cst_75 = arith.constant dense<0.000000e+00> : vector<8x64xf32>
      %139 = tpu.matmul %137, %138, %cst_75 {dimension_numbers = #tpu.dot_dimension_numbers<[1], [0], [0], [1], [0, 0, 1, 1], [], []>} : vector<8x64xbf16>, vector<64x64xbf16>, vector<8x64xf32> -> vector<8x64xf32>
      %c0_76 = arith.constant 0 : index
      %c0_77 = arith.constant 0 : index
      %140 = vector.load %arg21[%c0_76, %c0_77] : memref<1x64xf32, #tpu.memory_space<vmem>>, vector<1x64xf32>
      %141 = vector.broadcast %140 : vector<1x64xf32> to vector<8x64xf32>
      %142 = arith.addf %139, %141 : vector<8x64xf32>
      %143 = arith.negf %142 : vector<8x64xf32>
      %144 = math.exp %143 : vector<8x64xf32>
      %cst_78 = arith.constant 1.000000e+00 : f32
      %145 = vector.broadcast %cst_78 : f32 to vector<8x64xf32>
      %146 = arith.addf %145, %144 : vector<8x64xf32>
      %147 = arith.divf %145, %146 : vector<8x64xf32>
      %148 = arith.mulf %142, %147 : vector<8x64xf32>
      %149 = arith.truncf %148 : vector<8x64xf32> to vector<8x64xbf16>
      %c0_79 = arith.constant 0 : index
      %c0_80 = arith.constant 0 : index
      %150 = vector.load %arg22[%c0_79, %c0_80] : memref<64x32xbf16, #tpu.memory_space<vmem>>, vector<64x32xbf16>
      %cst_81 = arith.constant dense<0.000000e+00> : vector<8x32xf32>
      %151 = tpu.matmul %149, %150, %cst_81 {dimension_numbers = #tpu.dot_dimension_numbers<[1], [0], [0], [1], [0, 0, 1, 1], [], []>} : vector<8x64xbf16>, vector<64x32xbf16>, vector<8x32xf32> -> vector<8x32xf32>
      %c0_82 = arith.constant 0 : index
      %c0_83 = arith.constant 0 : index
      %152 = vector.load %arg23[%c0_82, %c0_83] : memref<1x32xf32, #tpu.memory_space<vmem>>, vector<1x32xf32>
      %153 = vector.broadcast %152 : vector<1x32xf32> to vector<8x32xf32>
      %154 = arith.addf %151, %153 : vector<8x32xf32>
      %155 = vector.broadcast %118 : vector<8x1xf32> to vector<8x32xf32>
      %156 = arith.mulf %154, %155 : vector<8x32xf32>
      %157 = arith.addf %133, %156 : vector<8x32xf32>
      %c0_84 = arith.constant 0 : index
      %c0_85 = arith.constant 0 : index
      %c0_86 = arith.constant 0 : index
      %158 = vector.load %arg24[%c0_84, %c0_85, %c0_86] : memref<1x8x32xf32, #tpu.memory_space<vmem>>, vector<1x8x32xf32>
      %159 = vector.shape_cast %158 : vector<1x8x32xf32> to vector<8x32xf32>
      %160 = vector.shape_cast %157 : vector<8x32xf32> to vector<1x8x32xf32>
      tpu.vector_store %arg24[%c0_84, %c0_85, %c0_86], %160 {strides = array<i32>} : memref<1x8x32xf32, #tpu.memory_space<vmem>>, vector<1x8x32xf32>,
    } else {
    }
    return
  }
  func.func @transform_0(%arg0: i32, %arg1: i32, %arg2: i32) -> (i32, i32, i32) {
    %c0_i32 = arith.constant 0 : i32
    %c0_i32_0 = arith.constant 0 : i32
    return %arg0, %arg1, %c0_i32 : i32, i32, i32
  }
  func.func @transform_1(%arg0: i32, %arg1: i32, %arg2: i32) -> (i32, i32, i32) {
    %c0_i32 = arith.constant 0 : i32
    %c0_i32_0 = arith.constant 0 : i32
    return %arg0, %arg2, %c0_i32 : i32, i32, i32
  }
  func.func @transform_2(%arg0: i32, %arg1: i32, %arg2: i32) -> (i32, i32, i32) {
    %c0_i32 = arith.constant 0 : i32
    %c0_i32_0 = arith.constant 0 : i32
    return %arg0, %arg1, %c0_i32 : i32, i32, i32
  }
  func.func @transform_3(%arg0: i32, %arg1: i32, %arg2: i32) -> (i32, i32, i32) {
    %c0_i32 = arith.constant 0 : i32
    %c0_i32_0 = arith.constant 0 : i32
    return %arg0, %arg2, %c0_i32 : i32, i32, i32
  }
  func.func @transform_4(%arg0: i32, %arg1: i32, %arg2: i32) -> (i32, i32, i32) {
    %c0_i32 = arith.constant 0 : i32
    %c0_i32_0 = arith.constant 0 : i32
    return %arg0, %arg1, %c0_i32 : i32, i32, i32
  }
  func.func @transform_5(%arg0: i32, %arg1: i32, %arg2: i32) -> (i32, i32, i32) {
    %c0_i32 = arith.constant 0 : i32
    %c0_i32_0 = arith.constant 0 : i32
    return %arg0, %arg2, %c0_i32 : i32, i32, i32
  }
  func.func @transform_6(%arg0: i32, %arg1: i32, %arg2: i32) -> (i32, i32, i32) {
    %c0_i32 = arith.constant 0 : i32
    %c0_i32_0 = arith.constant 0 : i32
    %c0_i32_1 = arith.constant 0 : i32
    return %arg0, %c0_i32, %c0_i32_0 : i32, i32, i32
  }
  func.func @transform_7(%arg0: i32, %arg1: i32, %arg2: i32) -> (i32, i32) {
    %c0_i32 = arith.constant 0 : i32
    %c0_i32_0 = arith.constant 0 : i32
    %c0_i32_1 = arith.constant 0 : i32
    return %c0_i32, %c0_i32_0 : i32, i32
  }
  func.func @transform_8(%arg0: i32, %arg1: i32, %arg2: i32) -> (i32, i32) {
    %c0_i32 = arith.constant 0 : i32
    %c0_i32_0 = arith.constant 0 : i32
    %c0_i32_1 = arith.constant 0 : i32
    return %c0_i32, %c0_i32_0 : i32, i32
  }
  func.func @transform_9(%arg0: i32, %arg1: i32, %arg2: i32) -> (i32, i32) {
    %c0_i32 = arith.constant 0 : i32
    %c0_i32_0 = arith.constant 0 : i32
    %c0_i32_1 = arith.constant 0 : i32
    return %c0_i32, %c0_i32_0 : i32, i32
  }
  func.func @transform_10(%arg0: i32, %arg1: i32, %arg2: i32) -> (i32, i32) {
    %c0_i32 = arith.constant 0 : i32
    %c0_i32_0 = arith.constant 0 : i32
    %c0_i32_1 = arith.constant 0 : i32
    return %c0_i32, %c0_i32_0 : i32, i32
  }
  func.func @transform_11(%arg0: i32, %arg1: i32, %arg2: i32) -> (i32, i32) {
    %c0_i32 = arith.constant 0 : i32
    %c0_i32_0 = arith.constant 0 : i32
    %c0_i32_1 = arith.constant 0 : i32
    return %c0_i32, %c0_i32_0 : i32, i32
  }
  func.func @transform_12(%arg0: i32, %arg1: i32, %arg2: i32) -> (i32, i32) {
    %c0_i32 = arith.constant 0 : i32
    %c0_i32_0 = arith.constant 0 : i32
    %c0_i32_1 = arith.constant 0 : i32
    return %c0_i32, %c0_i32_0 : i32, i32
  }
  func.func @transform_13(%arg0: i32, %arg1: i32, %arg2: i32) -> (i32, i32) {
    %c0_i32 = arith.constant 0 : i32
    %c0_i32_0 = arith.constant 0 : i32
    %c0_i32_1 = arith.constant 0 : i32
    return %c0_i32, %c0_i32_0 : i32, i32
  }
  func.func @transform_14(%arg0: i32, %arg1: i32, %arg2: i32) -> (i32, i32) {
    %c0_i32 = arith.constant 0 : i32
    %c0_i32_0 = arith.constant 0 : i32
    %c0_i32_1 = arith.constant 0 : i32
    return %c0_i32, %c0_i32_0 : i32, i32
  }
  func.func @transform_15(%arg0: i32, %arg1: i32, %arg2: i32) -> (i32, i32) {
    %c0_i32 = arith.constant 0 : i32
    %c0_i32_0 = arith.constant 0 : i32
    %c0_i32_1 = arith.constant 0 : i32
    return %c0_i32, %c0_i32_0 : i32, i32
  }
  func.func @transform_16(%arg0: i32, %arg1: i32, %arg2: i32) -> (i32, i32) {
    %c0_i32 = arith.constant 0 : i32
    %c0_i32_0 = arith.constant 0 : i32
    %c0_i32_1 = arith.constant 0 : i32
    return %c0_i32, %c0_i32_0 : i32, i32
  }
  func.func @transform_17(%arg0: i32, %arg1: i32, %arg2: i32) -> (i32, i32) {
    %c0_i32 = arith.constant 0 : i32
    %c0_i32_0 = arith.constant 0 : i32
    %c0_i32_1 = arith.constant 0 : i32
    return %c0_i32, %c0_i32_0 : i32, i32
  }
  func.func @transform_18(%arg0: i32, %arg1: i32, %arg2: i32) -> (i32, i32) {
    %c0_i32 = arith.constant 0 : i32
    %c0_i32_0 = arith.constant 0 : i32
    %c0_i32_1 = arith.constant 0 : i32
    return %c0_i32, %c0_i32_0 : i32, i32
  }
  func.func @transform_19(%arg0: i32, %arg1: i32, %arg2: i32) -> (i32, i32) {
    %c0_i32 = arith.constant 0 : i32
    %c0_i32_0 = arith.constant 0 : i32
    %c0_i32_1 = arith.constant 0 : i32
    return %c0_i32, %c0_i32_0 : i32, i32
  }
  func.func @transform_20(%arg0: i32, %arg1: i32, %arg2: i32) -> (i32, i32) {
    %c0_i32 = arith.constant 0 : i32
    %c0_i32_0 = arith.constant 0 : i32
    %c0_i32_1 = arith.constant 0 : i32
    return %c0_i32, %c0_i32_0 : i32, i32
  }
  func.func @transform_21(%arg0: i32, %arg1: i32, %arg2: i32) -> (i32, i32, i32) {
    %c0_i32 = arith.constant 0 : i32
    %c0_i32_0 = arith.constant 0 : i32
    return %arg0, %arg1, %c0_i32 : i32, i32, i32
  }
  func.func @transform_22(%arg0: i32, %arg1: i32, %arg2: i32) -> (i32, i32, i32) {
    %c0_i32 = arith.constant 0 : i32
    %c0_i32_0 = arith.constant 0 : i32
    return %arg0, %arg1, %c0_i32 : i32, i32, i32
  }
}

</mosaic_0001>

<llo_original>
// kernel: tpu_custom_call.1
$region0: #{tpu_custom_call.1}
  #allocation0 [shape = 'u32[]', space=smem, size = 0x4, offset = 0x4, fixed_abs, tag = 'smem constant byte address 0x4 - core index']
  #allocation1 [shape = 'u32[72,128]{1,0:T(1,128)}', space=vmem, size = 0x9000, scoped, tag = 'internal scratch']
  #allocation2 [shape = 'f32[8,32]{1,0:T(8,128)}', space=vmem, size = 0x1000, scoped, tag = 'scratch operand']
  #allocation3 [shape = 'f32[8,32]{1,0:T(8,128)}', space=vmem, size = 0x1000, scoped, tag = 'scratch operand']
  #allocation4 [shape = 'f32[8,4]{1,0:T(8,128)}', space=vmem, size = 0x1000, scoped, tag = 'scratch operand']
  #allocation5 [shape = 'f32[1,1]{1,0:T(1,128)S(1)}', space=vmem, size = 0x200, scoped, tag = 'scoped memory for tpu_custom_call.1']
  %s0 = inlined_call_operand.vmem [shape: f32[2,16,32], index: 0, kind: input, shape index: {}]
  %s1 = inlined_call_operand.vmem [shape: f32[2,16,32], index: 1, kind: input, shape index: {}]
  %s2 = inlined_call_operand.vmem [shape: f32[2,16,3], index: 2, kind: input, shape index: {}]
  %s3 = inlined_call_operand.vmem [shape: f32[2,16,3], index: 3, kind: input, shape index: {}]
  %s4 = inlined_call_operand.vmem [shape: f32[2,16,1], index: 4, kind: input, shape index: {}]
  %s5 = inlined_call_operand.vmem [shape: f32[2,16,1], index: 5, kind: input, shape index: {}]
  %s6 = inlined_call_operand.vmem [shape: f32[2,1,1], index: 6, kind: input, shape index: {}]
  %s7 = inlined_call_operand.vmem [shape: bf16[32,32], index: 7, kind: input, shape index: {}]
  %s8 = inlined_call_operand.vmem [shape: bf16[32,32], index: 8, kind: input, shape index: {}]
  %s9 = inlined_call_operand.vmem [shape: f32[1,32], index: 9, kind: input, shape index: {}]
  %s10 = inlined_call_operand.hbm [shape: f32[5,33], index: 10, kind: input, shape index: {}]
  %s11 = inlined_call_operand.vmem [shape: bf16[32,32], index: 11, kind: input, shape index: {}]
  %s12 = inlined_call_operand.vmem [shape: f32[1,32], index: 12, kind: input, shape index: {}]
  %s13 = inlined_call_operand.vmem [shape: bf16[32,128], index: 13, kind: input, shape index: {}]
  %s14 = inlined_call_operand.vmem [shape: f32[1,128], index: 14, kind: input, shape index: {}]
  %s15 = inlined_call_operand.vmem [shape: f32[1,128], index: 15, kind: input, shape index: {}]
  %s16 = inlined_call_operand.<no memory space> [shape: f32[1,1], index: 16, kind: input, shape index: {}]
  %s17 = inlined_call_operand.vmem [shape: bf16[64,64], index: 17, kind: input, shape index: {}]
  %s18 = inlined_call_operand.vmem [shape: f32[1,64], index: 18, kind: input, shape index: {}]
  %s19 = inlined_call_operand.vmem [shape: bf16[64,32], index: 19, kind: input, shape index: {}]
  %s20 = inlined_call_operand.vmem [shape: f32[1,32], index: 20, kind: input, shape index: {}]
  %s21 = inlined_call_operand.hbm [shape: f32[2,16,32], index: 21, kind: output, shape index: {0}]
  %s22 = inlined_call_operand.vmem [shape: f32[2,16,3], index: 22, kind: output, shape index: {1}]
  %23 = xla_tuple %s21, %s22
  %s24 = sld [smem:[#allocation0]]
  $region137: #{tpu_custom_call.1} parent=0
    _
  %s26 = ssub.s32 1, %s24
  %s27 = scalar_select 0, %s26, %s24
  %v28 = vstv %s16
  %29 = vst [vmem:[#allocation5] sm:$0x1] %v28
  $region1: #{tpu_custom_call.1} parent=0
    #allocation6 [shape = 'u8[4096]{0}', space=vmem, size = 0x1000, scoped, tag = 'input window, operand 10, single buffered']
    #allocation7 [shape = 's32[2]{0}', space=sflag, size = 0x8, scoped, tag = 'scoped memory for tpu_custom_call.1']
    #allocation8 [shape = 's32[2]{0}', space=sflag, size = 0x8, scoped, tag = 'scoped memory for tpu_custom_call.1']
    #allocation9 [shape = 'u8[8192]{0}', space=vmem, size = 0x2000, scoped, tag = 'output window, operand 0']
    %30 = vsyncpa [#allocation7], 0
    %31 = vsyncpa [#allocation8], 0
    %s32 = scalar_lea.sflag [#allocation8], 1
    %33 = vsyncpa %s32, 0
    loop: start=0, step=1, limit=10
    $region2: #{tpu_custom_call.1} parent=1 // loop_pre_header
      _
    $region3: #{tpu_custom_call.1} parent=1 // loop_header
      %s35 = sphi 0, %s39
      %p36 = scmp.ge.s32.totalorder %s35, 10
      %s42 = sphi 0, %s61
      %s43 = sphi 0, %s57
      %s44 = sphi 0, %s53
      %s45 = sphi 0, %s42
      %s46 = sphi 0, %s43
      %s47 = sphi 0, %s44
      %s48 = sphi 0, %s45
      %s49 = sphi 0, %s46
      %s50 = sphi 0, %s47
      %s66 = sphi 0, %s68
      %s69 = sphi 0, %s66
      %s70 = sphi 0, %s69
      %s86 = sphi 0, %s70
      %s94 = sphi 0, %s96
      %s97 = sphi 0, %s94
      %s98 = sphi 0, %s97
      %s114 = sphi 0, %s98
      %s122 = sphi 0, %s124
      %s125 = sphi 0, %s122
      %s126 = sphi 0, %s125
      %s142 = sphi 0, %s126
      %s150 = sphi 0, %s152
      %s153 = sphi 0, %s150
      %s154 = sphi 0, %s153
      %s170 = sphi 0, %s154
      %s178 = sphi 0, %s180
      %s181 = sphi 0, %s178
      %s182 = sphi 0, %s181
      %s198 = sphi 0, %s182
      %s206 = sphi 0, %s208
      %s209 = sphi 0, %s206
      %s210 = sphi 0, %s209
      %s226 = sphi 0, %s210
      %s232 = sphi 0, %s234
      %s235 = sphi 0, %s232
      %s236 = sphi 0, %s235
      %s252 = sphi 0, %s236
      %s256 = sphi 0, %s256
      %s258 = sphi 0, %s256
      %s259 = sphi 0, %s258
      %s273 = sphi 0, %s259
      %s277 = sphi 0, %s277
      %s279 = sphi 0, %s277
      %s280 = sphi 0, %s279
      %s294 = sphi 0, %s280
      %s298 = sphi 0, %s298
      %s300 = sphi 0, %s298
      %s301 = sphi 0, %s300
      %s315 = sphi 0, %s301
      %s319 = sphi 0, %s319
      %s321 = sphi 0, %s319
      %s322 = sphi 0, %s321
      %s336 = sphi 0, %s322
      %s340 = sphi 0, %s340
      %s342 = sphi 0, %s340
      %s343 = sphi 0, %s342
      %s357 = sphi 0, %s343
      %s361 = sphi 0, %s361
      %s363 = sphi 0, %s361
      %s364 = sphi 0, %s363
      %s378 = sphi 0, %s364
      %s382 = sphi 0, %s382
      %s384 = sphi 0, %s382
      %s385 = sphi 0, %s384
      %s399 = sphi 0, %s385
      %s403 = sphi 0, %s403
      %s405 = sphi 0, %s403
      %s406 = sphi 0, %s405
      %s420 = sphi 0, %s406
      %s424 = sphi 0, %s424
      %s426 = sphi 0, %s424
      %s427 = sphi 0, %s426
      %s441 = sphi 0, %s427
      %s445 = sphi 0, %s445
      %s447 = sphi 0, %s445
      %s448 = sphi 0, %s447
      %s462 = sphi 0, %s448
      %s466 = sphi 0, %s466
      %s468 = sphi 0, %s466
      %s469 = sphi 0, %s468
      %s483 = sphi 0, %s469
      %s487 = sphi 0, %s487
      %s489 = sphi 0, %s487
      %s490 = sphi 0, %s489
      %s504 = sphi 0, %s490
      %s508 = sphi 0, %s508
      %s510 = sphi 0, %s508
      %s511 = sphi 0, %s510
      %s525 = sphi 0, %s511
      %s529 = sphi 0, %s529
      %s531 = sphi 0, %s529
      %s532 = sphi 0, %s531
      %s546 = sphi 0, %s532
      %s554 = sphi 0, %s556
      %s557 = sphi 0, %s554
      %s558 = sphi 0, %s557
      %s574 = sphi 0, %s558
      %s582 = sphi 0, %s584
      %s585 = sphi 0, %s582
      %s586 = sphi 0, %s585
      %s602 = sphi 0, %s586
    $region4: #{tpu_custom_call.1} parent=1 // loop_header_branch
      %38 = sbr.rel (%p36) target = $region8
    $region5: #{tpu_custom_call.1} parent=1 // loop_body
      %s40 = ssub.s32 %s35, 1
      %s41 = ssub.s32 %s35, 2
      %s51 = sadd.s32 1, %s44
      %p52 = scmp.ge.s32.totalorder %s51, 2
      %s53 = scalar_select %p52, 0, %s51
      %s54 = sadd.s32 1, %s43
      %s55 = scalar_select %p52, %s54, %s43
      %p56 = scmp.ge.s32.totalorder %s55, 2
      %s57 = scalar_select %p56, 0, %s55
      %s58 = sadd.s32 1, %s42
      %s59 = scalar_select %p56, %s58, %s42
      %p60 = scmp.ge.s32.totalorder %s59, 2
      %s61 = scalar_select %p60, 0, %s59
      %s62 = ssub.s32 %s42, %s61
      %s63 = ssub.s32 %s43, %s57
      %s64 = sor.u32 %s62, %s63
      %p65 = scmp.eq.s32.totalorder %s64, 0
      %s67 = sadd.s32 %s66, 1
      %s68 = scalar_select %p65, %s66, %s67
      %p71 = pneg %p65
      %p72 = scmp.eq.s32.totalorder %s35, 7
      %p73 = por %p71, %p72
      %p74 = scmp.ne.s32.totalorder %s66, %s69
      %p75 = scmp.eq.s32.totalorder %s35, 0
      %p76 = por %p74, %p75
      %p77 = scmp.ne.s32.totalorder %s66, %s69
      %p78 = scmp.eq.s32.totalorder %s40, 7
      %p79 = por %p77, %p78
      %p80 = scmp.ne.s32.totalorder %s69, %s70
      %p81 = scmp.eq.s32.totalorder %s40, 0
      %p82 = por %p80, %p81
      %p83 = scmp.ne.s32.totalorder %s69, %s70
      %p84 = scmp.eq.s32.totalorder %s41, 7
      %p85 = por %p83, %p84
      %p87 = scmp.ne.s32.totalorder %s70, %s86
      %p88 = scmp.eq.s32.totalorder %s41, 0
      %p89 = por %p87, %p88
      %s90 = ssub.s32 %s42, %s61
      %s91 = ssub.s32 %s44, %s53
      %s92 = sor.u32 %s90, %s91
      %p93 = scmp.eq.s32.totalorder %s92, 0
      %s95 = sadd.s32 %s94, 1
      %s96 = scalar_select %p93, %s94, %s95
      %p99 = pneg %p93
      %p100 = scmp.eq.s32.totalorder %s35, 7
      %p101 = por %p99, %p100
      %p102 = scmp.ne.s32.totalorder %s94, %s97
      %p103 = scmp.eq.s32.totalorder %s35, 0
      %p104 = por %p102, %p103
      %p105 = scmp.ne.s32.totalorder %s94, %s97
      %p106 = scmp.eq.s32.totalorder %s40, 7
      %p107 = por %p105, %p106
      %p108 = scmp.ne.s32.totalorder %s97, %s98
      %p109 = scmp.eq.s32.totalorder %s40, 0
      %p110 = por %p108, %p109
      %p111 = scmp.ne.s32.totalorder %s97, %s98
      %p112 = scmp.eq.s32.totalorder %s41, 7
      %p113 = por %p111, %p112
      %p115 = scmp.ne.s32.totalorder %s98, %s114
      %p116 = scmp.eq.s32.totalorder %s41, 0
      %p117 = por %p115, %p116
      %s118 = ssub.s32 %s42, %s61
      %s119 = ssub.s32 %s43, %s57
      %s120 = sor.u32 %s118, %s119
      %p121 = scmp.eq.s32.totalorder %s120, 0
      %s123 = sadd.s32 %s122, 1
      %s124 = scalar_select %p121, %s122, %s123
      %p127 = pneg %p121
      %p128 = scmp.eq.s32.totalorder %s35, 7
      %p129 = por %p127, %p128
      %p130 = scmp.ne.s32.totalorder %s122, %s125
      %p131 = scmp.eq.s32.totalorder %s35, 0
      %p132 = por %p130, %p131
      %p133 = scmp.ne.s32.totalorder %s122, %s125
      %p134 = scmp.eq.s32.totalorder %s40, 7
      %p135 = por %p133, %p134
      %p136 = scmp.ne.s32.totalorder %s125, %s126
      %p137 = scmp.eq.s32.totalorder %s40, 0
      %p138 = por %p136, %p137
      %p139 = scmp.ne.s32.totalorder %s125, %s126
      %p140 = scmp.eq.s32.totalorder %s41, 7
      %p141 = por %p139, %p140
      %p143 = scmp.ne.s32.totalorder %s126, %s142
      %p144 = scmp.eq.s32.totalorder %s41, 0
      %p145 = por %p143, %p144
      %s146 = ssub.s32 %s42, %s61
      %s147 = ssub.s32 %s44, %s53
      %s148 = sor.u32 %s146, %s147
      %p149 = scmp.eq.s32.totalorder %s148, 0
      %s151 = sadd.s32 %s150, 1
      %s152 = scalar_select %p149, %s150, %s151
      %p155 = pneg %p149
      %p156 = scmp.eq.s32.totalorder %s35, 7
      %p157 = por %p155, %p156
      %p158 = scmp.ne.s32.totalorder %s150, %s153
      %p159 = scmp.eq.s32.totalorder %s35, 0
      %p160 = por %p158, %p159
      %p161 = scmp.ne.s32.totalorder %s150, %s153
      %p162 = scmp.eq.s32.totalorder %s40, 7
      %p163 = por %p161, %p162
      %p164 = scmp.ne.s32.totalorder %s153, %s154
      %p165 = scmp.eq.s32.totalorder %s40, 0
      %p166 = por %p164, %p165
      %p167 = scmp.ne.s32.totalorder %s153, %s154
      %p168 = scmp.eq.s32.totalorder %s41, 7
      %p169 = por %p167, %p168
      %p171 = scmp.ne.s32.totalorder %s154, %s170
      %p172 = scmp.eq.s32.totalorder %s41, 0
      %p173 = por %p171, %p172
      %s174 = ssub.s32 %s42, %s61
      %s175 = ssub.s32 %s43, %s57
      %s176 = sor.u32 %s174, %s175
      %p177 = scmp.eq.s32.totalorder %s176, 0
      %s179 = sadd.s32 %s178, 1
      %s180 = scalar_select %p177, %s178, %s179
      %p183 = pneg %p177
      %p184 = scmp.eq.s32.totalorder %s35, 7
      %p185 = por %p183, %p184
      %p186 = scmp.ne.s32.totalorder %s178, %s181
      %p187 = scmp.eq.s32.totalorder %s35, 0
      %p188 = por %p186, %p187
      %p189 = scmp.ne.s32.totalorder %s178, %s181
      %p190 = scmp.eq.s32.totalorder %s40, 7
      %p191 = por %p189, %p190
      %p192 = scmp.ne.s32.totalorder %s181, %s182
      %p193 = scmp.eq.s32.totalorder %s40, 0
      %p194 = por %p192, %p193
      %p195 = scmp.ne.s32.totalorder %s181, %s182
      %p196 = scmp.eq.s32.totalorder %s41, 7
      %p197 = por %p195, %p196
      %p199 = scmp.ne.s32.totalorder %s182, %s198
      %p200 = scmp.eq.s32.totalorder %s41, 0
      %p201 = por %p199, %p200
      %s202 = ssub.s32 %s42, %s61
      %s203 = ssub.s32 %s44, %s53
      %s204 = sor.u32 %s202, %s203
      %p205 = scmp.eq.s32.totalorder %s204, 0
      %s207 = sadd.s32 %s206, 1
      %s208 = scalar_select %p205, %s206, %s207
      %p211 = pneg %p205
      %p212 = scmp.eq.s32.totalorder %s35, 7
      %p213 = por %p211, %p212
      %p214 = scmp.ne.s32.totalorder %s206, %s209
      %p215 = scmp.eq.s32.totalorder %s35, 0
      %p216 = por %p214, %p215
      %p217 = scmp.ne.s32.totalorder %s206, %s209
      %p218 = scmp.eq.s32.totalorder %s40, 7
      %p219 = por %p217, %p218
      %p220 = scmp.ne.s32.totalorder %s209, %s210
      %p221 = scmp.eq.s32.totalorder %s40, 0
      %p222 = por %p220, %p221
      %p223 = scmp.ne.s32.totalorder %s209, %s210
      %p224 = scmp.eq.s32.totalorder %s41, 7
      %p225 = por %p223, %p224
      %p227 = scmp.ne.s32.totalorder %s210, %s226
      %p228 = scmp.eq.s32.totalorder %s41, 0
      %p229 = por %p227, %p228
      %s230 = ssub.s32 %s42, %s61
      %p231 = scmp.eq.s32.totalorder %s230, 0
      %s233 = sadd.s32 %s232, 1
      %s234 = scalar_select %p231, %s232, %s233
      %p237 = pneg %p231
      %p238 = scmp.eq.s32.totalorder %s35, 7
      %p239 = por %p237, %p238
      %p240 = scmp.ne.s32.totalorder %s232, %s235
      %p241 = scmp.eq.s32.totalorder %s35, 0
      %p242 = por %p240, %p241
      %p243 = scmp.ne.s32.totalorder %s232, %s235
      %p244 = scmp.eq.s32.totalorder %s40, 7
      %p245 = por %p243, %p244
      %p246 = scmp.ne.s32.totalorder %s235, %s236
      %p247 = scmp.eq.s32.totalorder %s40, 0
      %p248 = por %p246, %p247
      %p249 = scmp.ne.s32.totalorder %s235, %s236
      %p250 = scmp.eq.s32.totalorder %s41, 7
      %p251 = por %p249, %p250
      %p253 = scmp.ne.s32.totalorder %s236, %s252
      %p254 = scmp.eq.s32.totalorder %s41, 0
      %p255 = por %p253, %p254
      %s257 = sadd.s32 %s256, 1
      %p260 = scmp.eq.s32.totalorder %s35, 7
      %p261 = scmp.ne.s32.totalorder %s256, %s258
      %p262 = scmp.eq.s32.totalorder %s35, 0
      %p263 = por %p261, %p262
      %p264 = scmp.ne.s32.totalorder %s256, %s258
      %p265 = scmp.eq.s32.totalorder %s40, 7
      %p266 = por %p264, %p265
      %p267 = scmp.ne.s32.totalorder %s258, %s259
      %p268 = scmp.eq.s32.totalorder %s40, 0
      %p269 = por %p267, %p268
      %p270 = scmp.ne.s32.totalorder %s258, %s259
      %p271 = scmp.eq.s32.totalorder %s41, 7
      %p272 = por %p270, %p271
      %p274 = scmp.ne.s32.totalorder %s259, %s273
      %p275 = scmp.eq.s32.totalorder %s41, 0
      %p276 = por %p274, %p275
      %s278 = sadd.s32 %s277, 1
      %p281 = scmp.eq.s32.totalorder %s35, 7
      %p282 = scmp.ne.s32.totalorder %s277, %s279
      %p283 = scmp.eq.s32.totalorder %s35, 0
      %p284 = por %p282, %p283
      %p285 = scmp.ne.s32.totalorder %s277, %s279
      %p286 = scmp.eq.s32.totalorder %s40, 7
      %p287 = por %p285, %p286
      %p288 = scmp.ne.s32.totalorder %s279, %s280
      %p289 = scmp.eq.s32.totalorder %s40, 0
      %p290 = por %p288, %p289
      %p291 = scmp.ne.s32.totalorder %s279, %s280
      %p292 = scmp.eq.s32.totalorder %s41, 7
      %p293 = por %p291, %p292
      %p295 = scmp.ne.s32.totalorder %s280, %s294
      %p296 = scmp.eq.s32.totalorder %s41, 0
      %p297 = por %p295, %p296
      %s299 = sadd.s32 %s298, 1
      %p302 = scmp.eq.s32.totalorder %s35, 7
      %p303 = scmp.ne.s32.totalorder %s298, %s300
      %p304 = scmp.eq.s32.totalorder %s35, 0
      %p305 = por %p303, %p304
      %p306 = scmp.ne.s32.totalorder %s298, %s300
      %p307 = scmp.eq.s32.totalorder %s40, 7
      %p308 = por %p306, %p307
      %p309 = scmp.ne.s32.totalorder %s300, %s301
      %p310 = scmp.eq.s32.totalorder %s40, 0
      %p311 = por %p309, %p310
      %p312 = scmp.ne.s32.totalorder %s300, %s301
      %p313 = scmp.eq.s32.totalorder %s41, 7
      %p314 = por %p312, %p313
      %p316 = scmp.ne.s32.totalorder %s301, %s315
      %p317 = scmp.eq.s32.totalorder %s41, 0
      %p318 = por %p316, %p317
      %s320 = sadd.s32 %s319, 1
      %p323 = scmp.eq.s32.totalorder %s35, 7
      %p324 = scmp.ne.s32.totalorder %s319, %s321
      %p325 = scmp.eq.s32.totalorder %s35, 0
      %p326 = por %p324, %p325
      %p327 = scmp.ne.s32.totalorder %s319, %s321
      %p328 = scmp.eq.s32.totalorder %s40, 7
      %p329 = por %p327, %p328
      %p330 = scmp.ne.s32.totalorder %s321, %s322
      %p331 = scmp.eq.s32.totalorder %s40, 0
      %p332 = por %p330, %p331
      %p333 = scmp.ne.s32.totalorder %s321, %s322
      %p334 = scmp.eq.s32.totalorder %s41, 7
      %p335 = por %p333, %p334
      %p337 = scmp.ne.s32.totalorder %s322, %s336
      %p338 = scmp.eq.s32.totalorder %s41, 0
      %p339 = por %p337, %p338
      %s341 = sadd.s32 %s340, 1
      %p344 = scmp.eq.s32.totalorder %s35, 7
      %p345 = scmp.ne.s32.totalorder %s340, %s342
      %p346 = scmp.eq.s32.totalorder %s35, 0
      %p347 = por %p345, %p346
      %p348 = scmp.ne.s32.totalorder %s340, %s342
      %p349 = scmp.eq.s32.totalorder %s40, 7
      %p350 = por %p348, %p349
      %p351 = scmp.ne.s32.totalorder %s342, %s343
      %p352 = scmp.eq.s32.totalorder %s40, 0
      %p353 = por %p351, %p352
      %p354 = scmp.ne.s32.totalorder %s342, %s343
      %p355 = scmp.eq.s32.totalorder %s41, 7
      %p356 = por %p354, %p355
      %p358 = scmp.ne.s32.totalorder %s343, %s357
      %p359 = scmp.eq.s32.totalorder %s41, 0
      %p360 = por %p358, %p359
      %s362 = sadd.s32 %s361, 1
      %p365 = scmp.eq.s32.totalorder %s35, 7
      %p366 = scmp.ne.s32.totalorder %s361, %s363
      %p367 = scmp.eq.s32.totalorder %s35, 0
      %p368 = por %p366, %p367
      %p369 = scmp.ne.s32.totalorder %s361, %s363
      %p370 = scmp.eq.s32.totalorder %s40, 7
      %p371 = por %p369, %p370
      %p372 = scmp.ne.s32.totalorder %s363, %s364
      %p373 = scmp.eq.s32.totalorder %s40, 0
      %p374 = por %p372, %p373
      %p375 = scmp.ne.s32.totalorder %s363, %s364
      %p376 = scmp.eq.s32.totalorder %s41, 7
      %p377 = por %p375, %p376
      %p379 = scmp.ne.s32.totalorder %s364, %s378
      %p380 = scmp.eq.s32.totalorder %s41, 0
      %p381 = por %p379, %p380
      %s383 = sadd.s32 %s382, 1
      %p386 = scmp.eq.s32.totalorder %s35, 7
      %p387 = scmp.ne.s32.totalorder %s382, %s384
      %p388 = scmp.eq.s32.totalorder %s35, 0
      %p389 = por %p387, %p388
      %p390 = scmp.ne.s32.totalorder %s382, %s384
      %p391 = scmp.eq.s32.totalorder %s40, 7
      %p392 = por %p390, %p391
      %p393 = scmp.ne.s32.totalorder %s384, %s385
      %p394 = scmp.eq.s32.totalorder %s40, 0
      %p395 = por %p393, %p394
      %p396 = scmp.ne.s32.totalorder %s384, %s385
      %p397 = scmp.eq.s32.totalorder %s41, 7
      %p398 = por %p396, %p397
      %p400 = scmp.ne.s32.totalorder %s385, %s399
      %p401 = scmp.eq.s32.totalorder %s41, 0
      %p402 = por %p400, %p401
      %s404 = sadd.s32 %s403, 1
      %p407 = scmp.eq.s32.totalorder %s35, 7
      %p408 = scmp.ne.s32.totalorder %s403, %s405
      %p409 = scmp.eq.s32.totalorder %s35, 0
      %p410 = por %p408, %p409
      %p411 = scmp.ne.s32.totalorder %s403, %s405
      %p412 = scmp.eq.s32.totalorder %s40, 7
      %p413 = por %p411, %p412
      %p414 = scmp.ne.s32.totalorder %s405, %s406
      %p415 = scmp.eq.s32.totalorder %s40, 0
      %p416 = por %p414, %p415
      %p417 = scmp.ne.s32.totalorder %s405, %s406
      %p418 = scmp.eq.s32.totalorder %s41, 7
      %p419 = por %p417, %p418
      %p421 = scmp.ne.s32.totalorder %s406, %s420
      %p422 = scmp.eq.s32.totalorder %s41, 0
      %p423 = por %p421, %p422
      %s425 = sadd.s32 %s424, 1
      %p428 = scmp.eq.s32.totalorder %s35, 7
      %p429 = scmp.ne.s32.totalorder %s424, %s426
      %p430 = scmp.eq.s32.totalorder %s35, 0
      %p431 = por %p429, %p430
      %p432 = scmp.ne.s32.totalorder %s424, %s426
      %p433 = scmp.eq.s32.totalorder %s40, 7
      %p434 = por %p432, %p433
      %p435 = scmp.ne.s32.totalorder %s426, %s427
      %p436 = scmp.eq.s32.totalorder %s40, 0
      %p437 = por %p435, %p436
      %p438 = scmp.ne.s32.totalorder %s426, %s427
      %p439 = scmp.eq.s32.totalorder %s41, 7
      %p440 = por %p438, %p439
      %p442 = scmp.ne.s32.totalorder %s427, %s441
      %p443 = scmp.eq.s32.totalorder %s41, 0
      %p444 = por %p442, %p443
      %s446 = sadd.s32 %s445, 1
      %p449 = scmp.eq.s32.totalorder %s35, 7
      %p450 = scmp.ne.s32.totalorder %s445, %s447
      %p451 = scmp.eq.s32.totalorder %s35, 0
      %p452 = por %p450, %p451
      %p453 = scmp.ne.s32.totalorder %s445, %s447
      %p454 = scmp.eq.s32.totalorder %s40, 7
      %p455 = por %p453, %p454
      %p456 = scmp.ne.s32.totalorder %s447, %s448
      %p457 = scmp.eq.s32.totalorder %s40, 0
      %p458 = por %p456, %p457
      %p459 = scmp.ne.s32.totalorder %s447, %s448
      %p460 = scmp.eq.s32.totalorder %s41, 7
      %p461 = por %p459, %p460
      %p463 = scmp.ne.s32.totalorder %s448, %s462
      %p464 = scmp.eq.s32.totalorder %s41, 0
      %p465 = por %p463, %p464
      %s467 = sadd.s32 %s466, 1
      %p470 = scmp.eq.s32.totalorder %s35, 7
      %p471 = scmp.ne.s32.totalorder %s466, %s468
      %p472 = scmp.eq.s32.totalorder %s35, 0
      %p473 = por %p471, %p472
      %p474 = scmp.ne.s32.totalorder %s466, %s468
      %p475 = scmp.eq.s32.totalorder %s40, 7
      %p476 = por %p474, %p475
      %p477 = scmp.ne.s32.totalorder %s468, %s469
      %p478 = scmp.eq.s32.totalorder %s40, 0
      %p479 = por %p477, %p478
      %p480 = scmp.ne.s32.totalorder %s468, %s469
      %p481 = scmp.eq.s32.totalorder %s41, 7
      %p482 = por %p480, %p481
      %p484 = scmp.ne.s32.totalorder %s469, %s483
      %p485 = scmp.eq.s32.totalorder %s41, 0
      %p486 = por %p484, %p485
      %s488 = sadd.s32 %s487, 1
      %p491 = scmp.eq.s32.totalorder %s35, 7
      %p492 = scmp.ne.s32.totalorder %s487, %s489
      %p493 = scmp.eq.s32.totalorder %s35, 0
      %p494 = por %p492, %p493
      %p495 = scmp.ne.s32.totalorder %s487, %s489
      %p496 = scmp.eq.s32.totalorder %s40, 7
      %p497 = por %p495, %p496
      %p498 = scmp.ne.s32.totalorder %s489, %s490
      %p499 = scmp.eq.s32.totalorder %s40, 0
      %p500 = por %p498, %p499
      %p501 = scmp.ne.s32.totalorder %s489, %s490
      %p502 = scmp.eq.s32.totalorder %s41, 7
      %p503 = por %p501, %p502
      %p505 = scmp.ne.s32.totalorder %s490, %s504
      %p506 = scmp.eq.s32.totalorder %s41, 0
      %p507 = por %p505, %p506
      %s509 = sadd.s32 %s508, 1
      %p512 = scmp.eq.s32.totalorder %s35, 7
      %p513 = scmp.ne.s32.totalorder %s508, %s510
      %p514 = scmp.eq.s32.totalorder %s35, 0
      %p515 = por %p513, %p514
      %p516 = scmp.ne.s32.totalorder %s508, %s510
      %p517 = scmp.eq.s32.totalorder %s40, 7
      %p518 = por %p516, %p517
      %p519 = scmp.ne.s32.totalorder %s510, %s511
      %p520 = scmp.eq.s32.totalorder %s40, 0
      %p521 = por %p519, %p520
      %p522 = scmp.ne.s32.totalorder %s510, %s511
      %p523 = scmp.eq.s32.totalorder %s41, 7
      %p524 = por %p522, %p523
      %p526 = scmp.ne.s32.totalorder %s511, %s525
      %p527 = scmp.eq.s32.totalorder %s41, 0
      %p528 = por %p526, %p527
      %s530 = sadd.s32 %s529, 1
      %p533 = scmp.eq.s32.totalorder %s35, 7
      %p534 = scmp.ne.s32.totalorder %s529, %s531
      %p535 = scmp.eq.s32.totalorder %s35, 0
      %p536 = por %p534, %p535
      %p537 = scmp.ne.s32.totalorder %s529, %s531
      %p538 = scmp.eq.s32.totalorder %s40, 7
      %p539 = por %p537, %p538
      %p540 = scmp.ne.s32.totalorder %s531, %s532
      %p541 = scmp.eq.s32.totalorder %s40, 0
      %p542 = por %p540, %p541
      %p543 = scmp.ne.s32.totalorder %s531, %s532
      %p544 = scmp.eq.s32.totalorder %s41, 7
      %p545 = por %p543, %p544
      %p547 = scmp.ne.s32.totalorder %s532, %s546
      %p548 = scmp.eq.s32.totalorder %s41, 0
      %p549 = por %p547, %p548
      %s550 = ssub.s32 %s42, %s61
      %s551 = ssub.s32 %s43, %s57
      %s552 = sor.u32 %s550, %s551
      %p553 = scmp.eq.s32.totalorder %s552, 0
      %s555 = sadd.s32 %s554, 1
      %s556 = scalar_select %p553, %s554, %s555
      %p559 = pneg %p553
      %p560 = scmp.eq.s32.totalorder %s35, 7
      %p561 = por %p559, %p560
      %p562 = scmp.ne.s32.totalorder %s554, %s557
      %p563 = scmp.eq.s32.totalorder %s35, 0
      %p564 = por %p562, %p563
      %p565 = scmp.ne.s32.totalorder %s554, %s557
      %p566 = scmp.eq.s32.totalorder %s40, 7
      %p567 = por %p565, %p566
      %p568 = scmp.ne.s32.totalorder %s557, %s558
      %p569 = scmp.eq.s32.totalorder %s40, 0
      %p570 = por %p568, %p569
      %p571 = scmp.ne.s32.totalorder %s557, %s558
      %p572 = scmp.eq.s32.totalorder %s41, 7
      %p573 = por %p571, %p572
      %p575 = scmp.ne.s32.totalorder %s558, %s574
      %p576 = scmp.eq.s32.totalorder %s41, 0
      %p577 = por %p575, %p576
      %s578 = ssub.s32 %s42, %s61
      %s579 = ssub.s32 %s43, %s57
      %s580 = sor.u32 %s578, %s579
      %p581 = scmp.eq.s32.totalorder %s580, 0
      %s583 = sadd.s32 %s582, 1
      %s584 = scalar_select %p581, %s582, %s583
      %p587 = pneg %p581
      %p588 = scmp.eq.s32.totalorder %s35, 7
      %p589 = por %p587, %p588
      %p590 = scmp.ne.s32.totalorder %s582, %s585
      %p591 = scmp.eq.s32.totalorder %s35, 0
      %p592 = por %p590, %p591
      %p593 = scmp.ne.s32.totalorder %s582, %s585
      %p594 = scmp.eq.s32.totalorder %s40, 7
      %p595 = por %p593, %p594
      %p596 = scmp.ne.s32.totalorder %s585, %s586
      %p597 = scmp.eq.s32.totalorder %s40, 0
      %p598 = por %p596, %p597
      %p599 = scmp.ne.s32.totalorder %s585, %s586
      %p600 = scmp.eq.s32.totalorder %s41, 7
      %p601 = por %p599, %p600
      %p603 = scmp.ne.s32.totalorder %s586, %s602
      %p604 = scmp.eq.s32.totalorder %s41, 0
      %p605 = por %p603, %p604
      %p606 = scmp.le.s32.totalorder 1, %s35
      %p607 = scmp.lt.s32.totalorder %s35, 9
      %p608 = pnand %p606, %p607
      %p609 = pneg %p608
      // Predicated region
      $region9: #{tpu_custom_call.1} parent=5 // pred_check
        _
      $region10: #{tpu_custom_call.1} parent=5 // pred_check_branch
        %611 = sbr.rel (%p608) target = $region12
      $region11: #{tpu_custom_call.1} parent=5 // pred_region
        %s612 = ssub.s32 %s35, 1
        // Predicated region
        $region13: #{tpu_custom_call.1} parent=11 // pred_check
          %p613 = pneg %p269
        $region14: #{tpu_custom_call.1} parent=11 // pred_check_branch
          %615 = sbr.rel (%p613) target = $region16
        $region15: #{tpu_custom_call.1} parent=11 // pred_region
          _
        $region16: #{tpu_custom_call.1} parent=11 // pred_fallthru
          _
        // Predicated region
        $region17: #{tpu_custom_call.1} parent=11 // pred_check
          %p616 = pneg %p290
        $region18: #{tpu_custom_call.1} parent=11 // pred_check_branch
          %618 = sbr.rel (%p616) target = $region20
        $region19: #{tpu_custom_call.1} parent=11 // pred_region
          _
        $region20: #{tpu_custom_call.1} parent=11 // pred_fallthru
          _
        // Predicated region
        $region21: #{tpu_custom_call.1} parent=11 // pred_check
          %p619 = pneg %p311
        $region22: #{tpu_custom_call.1} parent=11 // pred_check_branch
          %621 = sbr.rel (%p619) target = $region24
        $region23: #{tpu_custom_call.1} parent=11 // pred_region
          _
        $region24: #{tpu_custom_call.1} parent=11 // pred_fallthru
          _
        // Predicated region
        $region25: #{tpu_custom_call.1} parent=11 // pred_check
          %p622 = pneg %p332
        $region26: #{tpu_custom_call.1} parent=11 // pred_check_branch
          %624 = sbr.rel (%p622) target = $region28
        $region27: #{tpu_custom_call.1} parent=11 // pred_region
          %626 = vsyncadd [#allocation7], 0
          %s628 = sshll.u32 %s10, 4
          %s629 = int_to_ptr.hbm [resolvable:$true] %s628
          %s630 = sshll.u32 [#allocation6], 4
          %s631 = int_to_ptr.vmem [resolvable:$true] %s630
          %633 = dma.hbm_to_vmem [thread:$0]  %s629, 128, %s631, [#allocation7]
        $region28: #{tpu_custom_call.1} parent=11 // pred_fallthru
          _
        // Predicated region
        $region29: #{tpu_custom_call.1} parent=11 // pred_check
          %p634 = pneg %p353
        $region30: #{tpu_custom_call.1} parent=11 // pred_check_branch
          %636 = sbr.rel (%p634) target = $region32
        $region31: #{tpu_custom_call.1} parent=11 // pred_region
          _
        $region32: #{tpu_custom_call.1} parent=11 // pred_fallthru
          _
        // Predicated region
        $region33: #{tpu_custom_call.1} parent=11 // pred_check
          %p637 = pneg %p374
        $region34: #{tpu_custom_call.1} parent=11 // pred_check_branch
          %639 = sbr.rel (%p637) target = $region36
        $region35: #{tpu_custom_call.1} parent=11 // pred_region
          _
        $region36: #{tpu_custom_call.1} parent=11 // pred_fallthru
          _
        // Predicated region
        $region37: #{tpu_custom_call.1} parent=11 // pred_check
          %p640 = pneg %p395
        $region38: #{tpu_custom_call.1} parent=11 // pred_check_branch
          %642 = sbr.rel (%p640) target = $region40
        $region39: #{tpu_custom_call.1} parent=11 // pred_region
          _
        $region40: #{tpu_custom_call.1} parent=11 // pred_fallthru
          _
        // Predicated region
        $region41: #{tpu_custom_call.1} parent=11 // pred_check
          %p643 = pneg %p416
        $region42: #{tpu_custom_call.1} parent=11 // pred_check_branch
          %645 = sbr.rel (%p643) target = $region44
        $region43: #{tpu_custom_call.1} parent=11 // pred_region
          _
        $region44: #{tpu_custom_call.1} parent=11 // pred_fallthru
          _
        // Predicated region
        $region45: #{tpu_custom_call.1} parent=11 // pred_check
          %p646 = pneg %p437
        $region46: #{tpu_custom_call.1} parent=11 // pred_check_branch
          %648 = sbr.rel (%p646) target = $region48
        $region47: #{tpu_custom_call.1} parent=11 // pred_region
          _
        $region48: #{tpu_custom_call.1} parent=11 // pred_fallthru
          _
        // Predicated region
        $region49: #{tpu_custom_call.1} parent=11 // pred_check
          %p649 = pneg %p458
        $region50: #{tpu_custom_call.1} parent=11 // pred_check_branch
          %651 = sbr.rel (%p649) target = $region52
        $region51: #{tpu_custom_call.1} parent=11 // pred_region
          _
        $region52: #{tpu_custom_call.1} parent=11 // pred_fallthru
          _
        // Predicated region
        $region53: #{tpu_custom_call.1} parent=11 // pred_check
          %p652 = pneg %p479
        $region54: #{tpu_custom_call.1} parent=11 // pred_check_branch
          %654 = sbr.rel (%p652) target = $region56
        $region55: #{tpu_custom_call.1} parent=11 // pred_region
          _
        $region56: #{tpu_custom_call.1} parent=11 // pred_fallthru
          _
        // Predicated region
        $region57: #{tpu_custom_call.1} parent=11 // pred_check
          %p655 = pneg %p500
        $region58: #{tpu_custom_call.1} parent=11 // pred_check_branch
          %657 = sbr.rel (%p655) target = $region60
        $region59: #{tpu_custom_call.1} parent=11 // pred_region
          _
        $region60: #{tpu_custom_call.1} parent=11 // pred_fallthru
          _
        // Predicated region
        $region61: #{tpu_custom_call.1} parent=11 // pred_check
          %p658 = pneg %p521
        $region62: #{tpu_custom_call.1} parent=11 // pred_check_branch
          %660 = sbr.rel (%p658) target = $region64
        $region63: #{tpu_custom_call.1} parent=11 // pred_region
          _
        $region64: #{tpu_custom_call.1} parent=11 // pred_fallthru
          _
        // Predicated region
        $region65: #{tpu_custom_call.1} parent=11 // pred_check
          %p661 = pneg %p542
        $region66: #{tpu_custom_call.1} parent=11 // pred_check_branch
          %663 = sbr.rel (%p661) target = $region68
        $region67: #{tpu_custom_call.1} parent=11 // pred_region
          _
        $region68: #{tpu_custom_call.1} parent=11 // pred_fallthru
          _
      $region12: #{tpu_custom_call.1} parent=5 // pred_fallthru
        _
      %p664 = scmp.lt.s32.totalorder %s35, 8
      // Predicated region
      $region69: #{tpu_custom_call.1} parent=5 // pred_check
        %p665 = pneg %p664
      $region70: #{tpu_custom_call.1} parent=5 // pred_check_branch
        %667 = sbr.rel (%p665) target = $region72
      $region71: #{tpu_custom_call.1} parent=5 // pred_region
        // Predicated region
        $region73: #{tpu_custom_call.1} parent=71 // pred_check
          %p668 = pneg %p76
        $region74: #{tpu_custom_call.1} parent=71 // pred_check_branch
          %670 = sbr.rel (%p668) target = $region76
        $region75: #{tpu_custom_call.1} parent=71 // pred_region
          %p671 = scmp.lt.s32.totalorder %s42, 1
          %s672 = scalar_select %p671, %s42, 1
          %p673 = scmp.lt.s32.totalorder %s43, 1
          %s674 = scalar_select %p673, %s43, 1
          %s675 = smul.addr %s672, 2
          %s676 = sadd.s32 %s674, %s675
          %s677 = smul.addr %s676, 8
          %s678 = scalar_lea.vmem %s0, %s677
        $region76: #{tpu_custom_call.1} parent=71 // pred_fallthru
          _
        // Predicated region
        $region77: #{tpu_custom_call.1} parent=71 // pred_check
          %p679 = pneg %p104
        $region78: #{tpu_custom_call.1} parent=71 // pred_check_branch
          %681 = sbr.rel (%p679) target = $region80
        $region79: #{tpu_custom_call.1} parent=71 // pred_region
          %p682 = scmp.lt.s32.totalorder %s42, 1
          %s683 = scalar_select %p682, %s42, 1
          %p684 = scmp.lt.s32.totalorder %s44, 1
          %s685 = scalar_select %p684, %s44, 1
          %s686 = smul.addr %s683, 2
          %s687 = sadd.s32 %s685, %s686
          %s688 = smul.addr %s687, 8
          %s689 = scalar_lea.vmem %s1, %s688
        $region80: #{tpu_custom_call.1} parent=71 // pred_fallthru
          _
        // Predicated region
        $region81: #{tpu_custom_call.1} parent=71 // pred_check
          %p690 = pneg %p132
        $region82: #{tpu_custom_call.1} parent=71 // pred_check_branch
          %692 = sbr.rel (%p690) target = $region84
        $region83: #{tpu_custom_call.1} parent=71 // pred_region
          %p693 = scmp.lt.s32.totalorder %s42, 1
          %s694 = scalar_select %p693, %s42, 1
          %p695 = scmp.lt.s32.totalorder %s43, 1
          %s696 = scalar_select %p695, %s43, 1
          %s697 = smul.addr %s694, 2
          %s698 = sadd.s32 %s696, %s697
          %s699 = smul.addr %s698, 8
          %s700 = scalar_lea.vmem %s2, %s699
        $region84: #{tpu_custom_call.1} parent=71 // pred_fallthru
          _
        // Predicated region
        $region85: #{tpu_custom_call.1} parent=71 // pred_check
          %p701 = pneg %p160
        $region86: #{tpu_custom_call.1} parent=71 // pred_check_branch
          %703 = sbr.rel (%p701) target = $region88
        $region87: #{tpu_custom_call.1} parent=71 // pred_region
          %p704 = scmp.lt.s32.totalorder %s42, 1
          %s705 = scalar_select %p704, %s42, 1
          %p706 = scmp.lt.s32.totalorder %s44, 1
          %s707 = scalar_select %p706, %s44, 1
          %s708 = smul.addr %s705, 2
          %s709 = sadd.s32 %s707, %s708
          %s710 = smul.addr %s709, 8
          %s711 = scalar_lea.vmem %s3, %s710
        $region88: #{tpu_custom_call.1} parent=71 // pred_fallthru
          _
        // Predicated region
        $region89: #{tpu_custom_call.1} parent=71 // pred_check
          %p712 = pneg %p188
        $region90: #{tpu_custom_call.1} parent=71 // pred_check_branch
          %714 = sbr.rel (%p712) target = $region92
        $region91: #{tpu_custom_call.1} parent=71 // pred_region
          %p715 = scmp.lt.s32.totalorder %s42, 1
          %s716 = scalar_select %p715, %s42, 1
          %p717 = scmp.lt.s32.totalorder %s43, 1
          %s718 = scalar_select %p717, %s43, 1
          %s719 = smul.addr %s716, 2
          %s720 = sadd.s32 %s718, %s719
          %s721 = smul.addr %s720, 8
          %s722 = scalar_lea.vmem %s4, %s721
        $region92: #{tpu_custom_call.1} parent=71 // pred_fallthru
          _
        // Predicated region
        $region93: #{tpu_custom_call.1} parent=71 // pred_check
          %p723 = pneg %p216
        $region94: #{tpu_custom_call.1} parent=71 // pred_check_branch
          %725 = sbr.rel (%p723) target = $region96
        $region95: #{tpu_custom_call.1} parent=71 // pred_region
          %p726 = scmp.lt.s32.totalorder %s42, 1
          %s727 = scalar_select %p726, %s42, 1
          %p728 = scmp.lt.s32.totalorder %s44, 1
          %s729 = scalar_select %p728, %s44, 1
          %s730 = smul.addr %s727, 2
          %s731 = sadd.s32 %s729, %s730
          %s732 = smul.addr %s731, 8
          %s733 = scalar_lea.vmem %s5, %s732
        $region96: #{tpu_custom_call.1} parent=71 // pred_fallthru
          _
        // Predicated region
        $region97: #{tpu_custom_call.1} parent=71 // pred_check
          %p734 = pneg %p242
        $region98: #{tpu_custom_call.1} parent=71 // pred_check_branch
          %736 = sbr.rel (%p734) target = $region100
        $region99: #{tpu_custom_call.1} parent=71 // pred_region
          %p737 = scmp.lt.s32.totalorder %s42, 1
          %s738 = scalar_select %p737, %s42, 1
          %s739 = scalar_lea.vmem %s6, %s738
        $region100: #{tpu_custom_call.1} parent=71 // pred_fallthru
          _
      $region72: #{tpu_custom_call.1} parent=5 // pred_fallthru
        _
      %p740 = scmp.le.s32.totalorder 1, %s35
      %p741 = scmp.lt.s32.totalorder %s35, 9
      %p742 = pnand %p740, %p741
      %p743 = pneg %p742
      // Predicated region
      $region101: #{tpu_custom_call.1} parent=5 // pred_check
        _
      $region102: #{tpu_custom_call.1} parent=5 // pred_check_branch
        %745 = sbr.rel (%p742) target = $region104
      $region103: #{tpu_custom_call.1} parent=5 // pred_region
        %s746 = ssub.s32 %s35, 1
        // Predicated region
        $region105: #{tpu_custom_call.1} parent=103 // pred_check
          %p747 = pneg %p332
        $region106: #{tpu_custom_call.1} parent=103 // pred_check_branch
          %749 = sbr.rel (%p747) target = $region108
        $region107: #{tpu_custom_call.1} parent=103 // pred_region
          %751 = dma.done [#allocation7], 128
        $region108: #{tpu_custom_call.1} parent=103 // pred_fallthru
          _
        %p752 = scmp.lt.s32.totalorder %s45, 1
        %s753 = scalar_select %p752, %s45, 1
        %p754 = scmp.lt.s32.totalorder %s46, 1
        %s755 = scalar_select %p754, %s46, 1
        %s756 = smul.addr %s753, 2
        %s757 = sadd.s32 %s755, %s756
        %s758 = smul.addr %s757, 8
        %s759 = scalar_lea.vmem %s0, %s758
        %p760 = pneg %p82
        %p761 = pneg %p79
        %p762 = scmp.lt.s32.totalorder %s45, 1
        %s763 = scalar_select %p762, %s45, 1
        %p764 = scmp.lt.s32.totalorder %s47, 1
        %s765 = scalar_select %p764, %s47, 1
        %s766 = smul.addr %s763, 2
        %s767 = sadd.s32 %s765, %s766
        %s768 = smul.addr %s767, 8
        %s769 = scalar_lea.vmem %s1, %s768
        %p770 = pneg %p110
        %p771 = pneg %p107
        %p772 = scmp.lt.s32.totalorder %s45, 1
        %s773 = scalar_select %p772, %s45, 1
        %p774 = scmp.lt.s32.totalorder %s46, 1
        %s775 = scalar_select %p774, %s46, 1
        %s776 = smul.addr %s773, 2
        %s777 = sadd.s32 %s775, %s776
        %s778 = smul.addr %s777, 8
        %s779 = scalar_lea.vmem %s2, %s778
        %p780 = pneg %p138
        %p781 = pneg %p135
        %p782 = scmp.lt.s32.totalorder %s45, 1
        %s783 = scalar_select %p782, %s45, 1
        %p784 = scmp.lt.s32.totalorder %s47, 1
        %s785 = scalar_select %p784, %s47, 1
        %s786 = smul.addr %s783, 2
        %s787 = sadd.s32 %s785, %s786
        %s788 = smul.addr %s787, 8
        %s789 = scalar_lea.vmem %s3, %s788
        %p790 = pneg %p166
        %p791 = pneg %p163
        %p792 = scmp.lt.s32.totalorder %s45, 1
        %s793 = scalar_select %p792, %s45, 1
        %p794 = scmp.lt.s32.totalorder %s46, 1
        %s795 = scalar_select %p794, %s46, 1
        %s796 = smul.addr %s793, 2
        %s797 = sadd.s32 %s795, %s796
        %s798 = smul.addr %s797, 8
        %s799 = scalar_lea.vmem %s4, %s798
        %p800 = pneg %p194
        %p801 = pneg %p191
        %p802 = scmp.lt.s32.totalorder %s45, 1
        %s803 = scalar_select %p802, %s45, 1
        %p804 = scmp.lt.s32.totalorder %s47, 1
        %s805 = scalar_select %p804, %s47, 1
        %s806 = smul.addr %s803, 2
        %s807 = sadd.s32 %s805, %s806
        %s808 = smul.addr %s807, 8
        %s809 = scalar_lea.vmem %s5, %s808
        %p810 = pneg %p222
        %p811 = pneg %p219
        %p812 = scmp.lt.s32.totalorder %s45, 1
        %s813 = scalar_select %p812, %s45, 1
        %s814 = scalar_lea.vmem %s6, %s813
        %p815 = pneg %p248
        %p816 = pneg %p245
        %p817 = pneg %p269
        %p818 = pneg %p266
        %p819 = pneg %p290
        %p820 = pneg %p287
        %p821 = pneg %p311
        %p822 = pneg %p308
        %p823 = pneg %p332
        %p824 = pneg %p329
        %p825 = pneg %p353
        %p826 = pneg %p350
        %p827 = pneg %p374
        %p828 = pneg %p371
        %p829 = pneg %p395
        %p830 = pneg %p392
        %p831 = pneg %p416
        %p832 = pneg %p413
        %p833 = pneg %p437
        %p834 = pneg %p434
        %p835 = pneg %p458
        %p836 = pneg %p455
        %p837 = pneg %p479
        %p838 = pneg %p476
        %p839 = pneg %p500
        %p840 = pneg %p497
        %p841 = pneg %p521
        %p842 = pneg %p518
        %p843 = pneg %p542
        %p844 = pneg %p539
        %p845 = pneg %p570
        %p846 = pneg %p567
        %s847 = sand.u32 %s557, 1
        %s848 = scalar_lea.sflag [#allocation8], %s847
        %s849 = sand.u32 %s557, 1
        %s850 = smul.addr %s849, 8
        %s851 = scalar_lea.vmem [#allocation9], %s850
        %p852 = pneg %p598
        %p853 = pneg %p595
        %p854 = scmp.lt.s32.totalorder %s45, 1
        %s855 = scalar_select %p854, %s45, 1
        %p856 = scmp.lt.s32.totalorder %s46, 1
        %s857 = scalar_select %p856, %s46, 1
        %s858 = smul.addr %s855, 2
        %s859 = sadd.s32 %s857, %s858
        %s860 = smul.addr %s859, 8
        %s861 = scalar_lea.vmem %s22, %s860
        %p862 = scmp.lt.s32.totalorder %s45, 1
        %s863 = scalar_select %p862, %s45, 1
        %p864 = scmp.lt.s32.totalorder %s46, 1
        %s865 = scalar_select %p864, %s46, 1
        %s866 = smul.addr %s863, 2
        %s867 = sadd.s32 %s865, %s866
        %s868 = smul.addr %s867, 8
        %s869 = scalar_lea.vmem %s0, %s868
        %p870 = scmp.lt.s32.totalorder %s45, 1
        %s871 = scalar_select %p870, %s45, 1
        %p872 = scmp.lt.s32.totalorder %s47, 1
        %s873 = scalar_select %p872, %s47, 1
        %s874 = smul.addr %s871, 2
        %s875 = sadd.s32 %s873, %s874
        %s876 = smul.addr %s875, 8
        %s877 = scalar_lea.vmem %s1, %s876
        %p878 = scmp.lt.s32.totalorder %s45, 1
        %s879 = scalar_select %p878, %s45, 1
        %p880 = scmp.lt.s32.totalorder %s46, 1
        %s881 = scalar_select %p880, %s46, 1
        %s882 = smul.addr %s879, 2
        %s883 = sadd.s32 %s881, %s882
        %s884 = smul.addr %s883, 8
        %s885 = scalar_lea.vmem %s2, %s884
        %p886 = scmp.lt.s32.totalorder %s45, 1
        %s887 = scalar_select %p886, %s45, 1
        %p888 = scmp.lt.s32.totalorder %s47, 1
        %s889 = scalar_select %p888, %s47, 1
        %s890 = smul.addr %s887, 2
        %s891 = sadd.s32 %s889, %s890
        %s892 = smul.addr %s891, 8
        %s893 = scalar_lea.vmem %s3, %s892
        %p894 = scmp.lt.s32.totalorder %s45, 1
        %s895 = scalar_select %p894, %s45, 1
        %p896 = scmp.lt.s32.totalorder %s46, 1
        %s897 = scalar_select %p896, %s46, 1
        %s898 = smul.addr %s895, 2
        %s899 = sadd.s32 %s897, %s898
        %s900 = smul.addr %s899, 8
        %s901 = scalar_lea.vmem %s4, %s900
        %p902 = scmp.lt.s32.totalorder %s45, 1
        %s903 = scalar_select %p902, %s45, 1
        %p904 = scmp.lt.s32.totalorder %s47, 1
        %s905 = scalar_select %p904, %s47, 1
        %s906 = smul.addr %s903, 2
        %s907 = sadd.s32 %s905, %s906
        %s908 = smul.addr %s907, 8
        %s909 = scalar_lea.vmem %s5, %s908
        %p910 = scmp.lt.s32.totalorder %s45, 1
        %s911 = scalar_select %p910, %s45, 1
        %s912 = scalar_lea.vmem %s6, %s911
        %p913 = scmp.lt.s32.totalorder %s45, 1
        %s914 = scalar_select %p913, %s45, 1
        %p915 = scmp.lt.s32.totalorder %s46, 1
        %s916 = scalar_select %p915, %s46, 1
        %s917 = smul.addr %s914, 2
        %s918 = sadd.s32 %s916, %s917
        %s919 = smul.addr %s918, 8
        %s920 = scalar_lea.vmem %s22, %s919
        %v922 = vld [vmem:[%s885] sm:$0xff]
        %v923 = vld [vmem:[%s893] sm:$0xff]
        %v924 = vld [vmem:[%s909] sm:$0xff]
        %p925 = scmp.eq.s32.totalorder %s47, 0
        // Predicated region
        $region109: #{tpu_custom_call.1} parent=103 // pred_check
          %p926 = pneg %p925
        $region110: #{tpu_custom_call.1} parent=103 // pred_check_branch
          %928 = sbr.rel (%p926) target = $region112
        $region111: #{tpu_custom_call.1} parent=103 // pred_region
          %v929 = vld [vmem:[%s869] sm:$0xff]
          %v930 = vpack.c.bf16 %v929, %v929
          %v931 = vld [vmem:[%s7] sm:$0xf]
          %v932 = vld [vmem:[%s7 + $0x4] sm:$0xf]
          %v933 = vld [vmem:[%s7 + $0x8] sm:$0xf]
          %v934 = vld [vmem:[%s7 + $0xc] sm:$0xf]
          %v935 = vld [vmem:[%s9] sm:$0x1]
          %v937 = vperm.slane %v935, 0
          %v943 = vunpack.c.l.b16 %v931
          %v944 = vunpack.c.l.b16 %v932
          %v945 = vunpack.c.l.b16 %v933
          %v946 = vunpack.c.l.b16 %v934
          %v947 = vpack.c.b16 %v944, %v943
          %v948 = vpack.c.b16 %v946, %v945
          %vm951 = vcmask 261120
          %v953 = vsel %vm951, %v930, 0
          %955 = vmatpush.bf16.msra.mxu0 0
          %956 = vmatpush.bf16.msra.mxu0 0
          %957 = vmatpush.bf16.msra.mxu0 0
          %958 = vmatpush.bf16.msra.mxu0 0
          %959 = vmatpush.bf16.msra.mxu0 0
          %960 = vmatpush.bf16.msra.mxu0 0
          %961 = vmatpush.bf16.msra.mxu0 %v948
          %962 = vmatpush.bf16.msra.mxu0 %v947
          %963 = vmatmul.bf16.gmra.mxu0 %v953
          %v964 = vpop.f32.mrf.mxu0
          %v965 = vadd.f32 %v937, %v964
          %v966 = vpop.f32.mrf.mxu0
          %967 = vdwg.mxu0
          %968 = vst.msk [vmem:[#allocation2] sm:$0xff] %vm951, %v965
          %969 = vst.msk [vmem:[#allocation3] sm:$0xff] %vm951, 0.0
          %vm970 = vcmask 31744
          %971 = vst.msk [vmem:[#allocation4] sm:$0xff] %vm970, 0.0
        $region112: #{tpu_custom_call.1} parent=103 // pred_fallthru
          _
        %v972 = vmul.f32 %v922, %v922
        %vm973 = vcmask 23552
        %v974 = vsel %vm973, %v972, 0.0
        %975 = vadd.xlane.f32.xlu0 %v974
        %v976 = vpop.xlane.xlu0 %975
        %v977 = vmul.f32 %v923, %v923
        %v978 = vsel %vm973, %v977, 0.0
        %979 = vadd.xlane.f32.xlu0 %v978
        %v980 = vpop.xlane.xlu0 %979
        %v981 = vmul.f32 %v923, -2.0
        %983 = vrot.lane.b32.xlu0 %v981, 2
        %v984 = vpop.permute.xlu0 %983
        %vm986 = vcmask 7168
        %v987 = vsel %vm986, %v980, 1.0
        %vm988 = vcmask 15360
        %v989 = vsel %vm988, %v987, %v984
        %991 = vrot.lane.b32.xlu0 %v922, 2
        %v992 = vpop.permute.xlu0 %991
        %v994 = vsel %vm986, 1.0, %v976
        %v995 = vsel %vm988, %v994, %v992
        %v997 = vrot.slane %v989, 1
        %v998 = vrot.slane %v989, 2
        %v999 = vrot.slane %v989, 3
        %v1000 = vrot.slane %v989, 4
        %v1001 = vrot.slane %v989, 5
        %v1002 = vrot.slane %v989, 6
        %v1003 = vrot.slane %v989, 7
        %v1004 = vperm.slane %v989, 0
        %v1005 = vperm.slane %v997, 0
        %v1006 = vperm.slane %v998, 0
        %v1007 = vperm.slane %v999, 0
        %v1008 = vperm.slane %v1000, 0
        %v1009 = vperm.slane %v1001, 0
        %v1010 = vperm.slane %v1002, 0
        %v1011 = vperm.slane %v1003, 0
        %v1020 = vmul.f32 %v1004, %v995
        %v1021 = vmul.f32 %v1005, %v995
        %v1022 = vmul.f32 %v1006, %v995
        %v1023 = vmul.f32 %v1007, %v995
        %v1024 = vmul.f32 %v1008, %v995
        %v1025 = vmul.f32 %v1009, %v995
        %v1026 = vmul.f32 %v1010, %v995
        %v1027 = vmul.f32 %v1011, %v995
        %v1028 = vld [vmem:[#allocation6] sm:$0x1f]
        %vm1029 = vcmask 39936
        %v1031 = vsel %vm1029, %v1020, 0
        %v1034 = vsel %vm1029, %v1021, 0
        %v1037 = vsel %vm1029, %v1022, 0
        %v1040 = vsel %vm1029, %v1023, 0
        %v1043 = vsel %vm1029, %v1024, 0
        %v1046 = vsel %vm1029, %v1025, 0
        %v1049 = vsel %vm1029, %v1026, 0
        %v1052 = vsel %vm1029, %v1027, 0
        %vm1054 = vcmask 1044480
        %v1056 = vsel %vm1054, %v1028, 0
        %1058 = vmatpush.msra.mxu0 0.0
        %1059 = vmatpush.msra.mxu0 0.0
        %1060 = vmatpush.msra.mxu0 0.0
        %1061 = vmatpush.msra.mxu0 0.0
        %1062 = vmatpush.msra.mxu0 0.0
        %1063 = vmatpush.msra.mxu0 0.0
        %1064 = vmatpush.msra.mxu0 0.0
        %1065 = vmatpush.msra.mxu0 0.0
        %1066 = vmatpush.msra.mxu0 0.0
        %1067 = vmatpush.msra.mxu0 0.0
        %1068 = vmatpush.msra.mxu0 0.0
        %1069 = vmatpush.msra.mxu0 0.0
        %1070 = vmatpush.msra.mxu0 0.0
        %1071 = vmatpush.msra.mxu0 0.0
        %1072 = vmatpush.msra.mxu0 0.0
        %1073 = vmatpush.msra.mxu0 %v1056
        %1074 = vmatmul.f32.gmra.mxu0 %v1031
        %v1075 = vpop.f32.mrf.mxu0
        %v1076 = vadd.f32 0.0, %v1075
        %1077 = vmatmul.f32.gmra.mxu0 %v1034
        %v1078 = vpop.f32.mrf.mxu0
        %v1079 = vadd.f32 0.0, %v1078
        %1080 = vmatmul.f32.gmra.mxu0 %v1037
        %v1081 = vpop.f32.mrf.mxu0
        %v1082 = vadd.f32 0.0, %v1081
        %1083 = vmatmul.f32.gmra.mxu0 %v1040
        %v1084 = vpop.f32.mrf.mxu0
        %v1085 = vadd.f32 0.0, %v1084
        %1086 = vmatmul.f32.gmra.mxu0 %v1043
        %v1087 = vpop.f32.mrf.mxu0
        %v1088 = vadd.f32 0.0, %v1087
        %1089 = vmatmul.f32.gmra.mxu0 %v1046
        %v1090 = vpop.f32.mrf.mxu0
        %v1091 = vadd.f32 0.0, %v1090
        %1092 = vmatmul.f32.gmra.mxu0 %v1049
        %v1093 = vpop.f32.mrf.mxu0
        %v1094 = vadd.f32 0.0, %v1093
        %1095 = vmatmul.f32.gmra.mxu0 %v1052
        %v1096 = vpop.f32.mrf.mxu0
        %v1097 = vadd.f32 0.0, %v1096
        %1098 = vdwg.mxu0
        %v1099 = vmax.f32 %v1076, 0.0
        %v1100 = vmax.f32 %v1079, 0.0
        %v1101 = vmax.f32 %v1082, 0.0
        %v1102 = vmax.f32 %v1085, 0.0
        %v1103 = vmax.f32 %v1088, 0.0
        %v1104 = vmax.f32 %v1091, 0.0
        %v1105 = vmax.f32 %v1094, 0.0
        %v1106 = vmax.f32 %v1097, 0.0
        %v1107 = vld [vmem:[%s877] sm:$0xff]
        %v1108 = vpack.c.bf16 %v1107, %v1107
        %v1109 = vld [vmem:[%s8] sm:$0xf]
        %v1110 = vld [vmem:[%s8 + $0x4] sm:$0xf]
        %v1111 = vld [vmem:[%s8 + $0x8] sm:$0xf]
        %v1112 = vld [vmem:[%s8 + $0xc] sm:$0xf]
        %v1117 = vunpack.c.l.b16 %v1109
        %v1118 = vunpack.c.l.b16 %v1110
        %v1119 = vunpack.c.l.b16 %v1111
        %v1120 = vunpack.c.l.b16 %v1112
        %v1121 = vpack.c.b16 %v1118, %v1117
        %v1122 = vpack.c.b16 %v1120, %v1119
        %vm1125 = vcmask 261120
        %v1127 = vsel %vm1125, %v1108, 0
        %1129 = vmatpush.bf16.msra.mxu0 0
        %1130 = vmatpush.bf16.msra.mxu0 0
        %1131 = vmatpush.bf16.msra.mxu0 0
        %1132 = vmatpush.bf16.msra.mxu0 0
        %1133 = vmatpush.bf16.msra.mxu0 0
        %1134 = vmatpush.bf16.msra.mxu0 0
        %1135 = vmatpush.bf16.msra.mxu0 %v1122
        %1136 = vmatpush.bf16.msra.mxu0 %v1121
        %1137 = vmatmul.bf16.gmra.mxu0 %v1127
        %v1138 = vpop.f32.mrf.mxu0
        %v1139 = vadd.f32 0.0, %v1138
        %v1140 = vpop.f32.mrf.mxu0
        %1141 = vdwg.mxu0
        %v1142 = vld [vmem:[#allocation2] sm:$0xff]
        %v1144 = vrot.slane %v1139, 1
        %v1145 = vrot.slane %v1139, 2
        %v1146 = vrot.slane %v1139, 3
        %v1147 = vrot.slane %v1139, 4
        %v1148 = vrot.slane %v1139, 5
        %v1149 = vrot.slane %v1139, 6
        %v1150 = vrot.slane %v1139, 7
        %v1151 = vperm.slane %v1139, 0
        %v1152 = vperm.slane %v1144, 0
        %v1153 = vperm.slane %v1145, 0
        %v1154 = vperm.slane %v1146, 0
        %v1155 = vperm.slane %v1147, 0
        %v1156 = vperm.slane %v1148, 0
        %v1157 = vperm.slane %v1149, 0
        %v1158 = vperm.slane %v1150, 0
        %v1167 = vadd.f32 %v1142, %v1151
        %v1168 = vadd.f32 %v1142, %v1152
        %v1169 = vadd.f32 %v1142, %v1153
        %v1170 = vadd.f32 %v1142, %v1154
        %v1171 = vadd.f32 %v1142, %v1155
        %v1172 = vadd.f32 %v1142, %v1156
        %v1173 = vadd.f32 %v1142, %v1157
        %v1174 = vadd.f32 %v1142, %v1158
        %v1175 = vadd.f32 %v1167, %v1076
        %v1176 = vadd.f32 %v1168, %v1079
        %v1177 = vadd.f32 %v1169, %v1082
        %v1178 = vadd.f32 %v1170, %v1085
        %v1179 = vadd.f32 %v1171, %v1088
        %v1180 = vadd.f32 %v1172, %v1091
        %v1181 = vadd.f32 %v1173, %v1094
        %v1182 = vadd.f32 %v1174, %v1097
        %v1183 = vxor.u32 %v1175, 2147483648
        %v1184 = vxor.u32 %v1176, 2147483648
        %v1185 = vxor.u32 %v1177, 2147483648
        %v1186 = vxor.u32 %v1178, 2147483648
        %v1187 = vxor.u32 %v1179, 2147483648
        %v1188 = vxor.u32 %v1180, 2147483648
        %v1189 = vxor.u32 %v1181, 2147483648
        %v1190 = vxor.u32 %v1182, 2147483648
        %v1191 = vmul.f32 %v1183, 1.442695
        %v1192 = vpow.pop %v1191
        %v1193 = vmul.f32 %v1184, 1.442695
        %v1194 = vpow.pop %v1193
        %v1195 = vmul.f32 %v1185, 1.442695
        %v1196 = vpow.pop %v1195
        %v1197 = vmul.f32 %v1186, 1.442695
        %v1198 = vpow.pop %v1197
        %v1199 = vmul.f32 %v1187, 1.442695
        %v1200 = vpow.pop %v1199
        %v1201 = vmul.f32 %v1188, 1.442695
        %v1202 = vpow.pop %v1201
        %v1203 = vmul.f32 %v1189, 1.442695
        %v1204 = vpow.pop %v1203
        %v1205 = vmul.f32 %v1190, 1.442695
        %v1206 = vpow.pop %v1205
        %v1207 = vadd.f32 %v1192, 1.0
        %v1208 = vadd.f32 %v1194, 1.0
        %v1209 = vadd.f32 %v1196, 1.0
        %v1210 = vadd.f32 %v1198, 1.0
        %v1211 = vadd.f32 %v1200, 1.0
        %v1212 = vadd.f32 %v1202, 1.0
        %v1213 = vadd.f32 %v1204, 1.0
        %v1214 = vadd.f32 %v1206, 1.0
        %v1215 = vrcp.pop %v1207
        %v1216 = vmul.f32 %v1207, %v1215
        %v1217 = vsub.f32 1.0, %v1216
        %v1218 = vmul.f32 %v1215, %v1217
        %v1219 = vadd.f32 %v1215, %v1218
        %vm1220 = vweird.f32 %v1207
        %vm1221 = vweird.f32 %v1215
        %vm1222 = vmor %vm1220, %vm1221
        %v1223 = vsel %vm1222, %v1215, %v1219
        %v1224 = vand.u32 2147483647, %v1207
        %vm1225 = vcmp.eq.f32.partialorder %v1224, 8.507059e+37
        %v1226 = vand.u32 %v1207, 2147483648
        %v1227 = vor.u32 1.1754944e-38, %v1226
        %v1228 = vsel %vm1225, %v1227, %v1223
        %v1229 = vmul.f32 1.0, %v1228
        %v1230 = vrcp.pop %v1208
        %v1231 = vmul.f32 %v1208, %v1230
        %v1232 = vsub.f32 1.0, %v1231
        %v1233 = vmul.f32 %v1230, %v1232
        %v1234 = vadd.f32 %v1230, %v1233
        %vm1235 = vweird.f32 %v1208
        %vm1236 = vweird.f32 %v1230
        %vm1237 = vmor %vm1235, %vm1236
        %v1238 = vsel %vm1237, %v1230, %v1234
        %v1239 = vand.u32 2147483647, %v1208
        %vm1240 = vcmp.eq.f32.partialorder %v1239, 8.507059e+37
        %v1241 = vand.u32 %v1208, 2147483648
        %v1242 = vor.u32 1.1754944e-38, %v1241
        %v1243 = vsel %vm1240, %v1242, %v1238
        %v1244 = vmul.f32 1.0, %v1243
        %v1245 = vrcp.pop %v1209
        %v1246 = vmul.f32 %v1209, %v1245
        %v1247 = vsub.f32 1.0, %v1246
        %v1248 = vmul.f32 %v1245, %v1247
        %v1249 = vadd.f32 %v1245, %v1248
        %vm1250 = vweird.f32 %v1209
        %vm1251 = vweird.f32 %v1245
        %vm1252 = vmor %vm1250, %vm1251
        %v1253 = vsel %vm1252, %v1245, %v1249
        %v1254 = vand.u32 2147483647, %v1209
        %vm1255 = vcmp.eq.f32.partialorder %v1254, 8.507059e+37
        %v1256 = vand.u32 %v1209, 2147483648
        %v1257 = vor.u32 1.1754944e-38, %v1256
        %v1258 = vsel %vm1255, %v1257, %v1253
        %v1259 = vmul.f32 1.0, %v1258
        %v1260 = vrcp.pop %v1210
        %v1261 = vmul.f32 %v1210, %v1260
        %v1262 = vsub.f32 1.0, %v1261
        %v1263 = vmul.f32 %v1260, %v1262
        %v1264 = vadd.f32 %v1260, %v1263
        %vm1265 = vweird.f32 %v1210
        %vm1266 = vweird.f32 %v1260
        %vm1267 = vmor %vm1265, %vm1266
        %v1268 = vsel %vm1267, %v1260, %v1264
        %v1269 = vand.u32 2147483647, %v1210
        %vm1270 = vcmp.eq.f32.partialorder %v1269, 8.507059e+37
        %v1271 = vand.u32 %v1210, 2147483648
        %v1272 = vor.u32 1.1754944e-38, %v1271
        %v1273 = vsel %vm1270, %v1272, %v1268
        %v1274 = vmul.f32 1.0, %v1273
        %v1275 = vrcp.pop %v1211
        %v1276 = vmul.f32 %v1211, %v1275
        %v1277 = vsub.f32 1.0, %v1276
        %v1278 = vmul.f32 %v1275, %v1277
        %v1279 = vadd.f32 %v1275, %v1278
        %vm1280 = vweird.f32 %v1211
        %vm1281 = vweird.f32 %v1275
        %vm1282 = vmor %vm1280, %vm1281
        %v1283 = vsel %vm1282, %v1275, %v1279
        %v1284 = vand.u32 2147483647, %v1211
        %vm1285 = vcmp.eq.f32.partialorder %v1284, 8.507059e+37
        %v1286 = vand.u32 %v1211, 2147483648
        %v1287 = vor.u32 1.1754944e-38, %v1286
        %v1288 = vsel %vm1285, %v1287, %v1283
        %v1289 = vmul.f32 1.0, %v1288
        %v1290 = vrcp.pop %v1212
        %v1291 = vmul.f32 %v1212, %v1290
        %v1292 = vsub.f32 1.0, %v1291
        %v1293 = vmul.f32 %v1290, %v1292
        %v1294 = vadd.f32 %v1290, %v1293
        %vm1295 = vweird.f32 %v1212
        %vm1296 = vweird.f32 %v1290
        %vm1297 = vmor %vm1295, %vm1296
        %v1298 = vsel %vm1297, %v1290, %v1294
        %v1299 = vand.u32 2147483647, %v1212
        %vm1300 = vcmp.eq.f32.partialorder %v1299, 8.507059e+37
        %v1301 = vand.u32 %v1212, 2147483648
        %v1302 = vor.u32 1.1754944e-38, %v1301
        %v1303 = vsel %vm1300, %v1302, %v1298
        %v1304 = vmul.f32 1.0, %v1303
        %v1305 = vrcp.pop %v1213
        %v1306 = vmul.f32 %v1213, %v1305
        %v1307 = vsub.f32 1.0, %v1306
        %v1308 = vmul.f32 %v1305, %v1307
        %v1309 = vadd.f32 %v1305, %v1308
        %vm1310 = vweird.f32 %v1213
        %vm1311 = vweird.f32 %v1305
        %vm1312 = vmor %vm1310, %vm1311
        %v1313 = vsel %vm1312, %v1305, %v1309
        %v1314 = vand.u32 2147483647, %v1213
        %vm1315 = vcmp.eq.f32.partialorder %v1314, 8.507059e+37
        %v1316 = vand.u32 %v1213, 2147483648
        %v1317 = vor.u32 1.1754944e-38, %v1316
        %v1318 = vsel %vm1315, %v1317, %v1313
        %v1319 = vmul.f32 1.0, %v1318
        %v1320 = vrcp.pop %v1214
        %v1321 = vmul.f32 %v1214, %v1320
        %v1322 = vsub.f32 1.0, %v1321
        %v1323 = vmul.f32 %v1320, %v1322
        %v1324 = vadd.f32 %v1320, %v1323
        %vm1325 = vweird.f32 %v1214
        %vm1326 = vweird.f32 %v1320
        %vm1327 = vmor %vm1325, %vm1326
        %v1328 = vsel %vm1327, %v1320, %v1324
        %v1329 = vand.u32 2147483647, %v1214
        %vm1330 = vcmp.eq.f32.partialorder %v1329, 8.507059e+37
        %v1331 = vand.u32 %v1214, 2147483648
        %v1332 = vor.u32 1.1754944e-38, %v1331
        %v1333 = vsel %vm1330, %v1332, %v1328
        %v1334 = vmul.f32 1.0, %v1333
        %v1335 = vmul.f32 %v1175, %v1229
        %v1336 = vmul.f32 %v1176, %v1244
        %v1337 = vmul.f32 %v1177, %v1259
        %v1338 = vmul.f32 %v1178, %v1274
        %v1339 = vmul.f32 %v1179, %v1289
        %v1340 = vmul.f32 %v1180, %v1304
        %v1341 = vmul.f32 %v1181, %v1319
        %v1342 = vmul.f32 %v1182, %v1334
        %v1343 = vpack.c.bf16 %v1336, %v1335
        %v1344 = vpack.c.bf16 %v1338, %v1337
        %v1345 = vpack.c.bf16 %v1340, %v1339
        %v1346 = vpack.c.bf16 %v1342, %v1341
        %v1347 = vld [vmem:[%s11] sm:$0xf]
        %v1348 = vld [vmem:[%s11 + $0x4] sm:$0xf]
        %v1349 = vld [vmem:[%s11 + $0x8] sm:$0xf]
        %v1350 = vld [vmem:[%s11 + $0xc] sm:$0xf]
        %v1351 = vld [vmem:[%s12] sm:$0x1]
        %v1353 = vperm.slane %v1351, 0
        %v1359 = vunpack.c.l.b16 %v1347
        %v1360 = vunpack.c.l.b16 %v1348
        %v1361 = vunpack.c.l.b16 %v1349
        %v1362 = vunpack.c.l.b16 %v1350
        %v1363 = vpack.c.b16 %v1360, %v1359
        %v1364 = vpack.c.b16 %v1362, %v1361
        %v1368 = vsel %vm1125, %v1343, 0
        %v1371 = vsel %vm1125, %v1344, 0
        %v1374 = vsel %vm1125, %v1345, 0
        %v1377 = vsel %vm1125, %v1346, 0
        %1379 = vmatpush.bf16.msra.mxu0 0
        %1380 = vmatpush.bf16.msra.mxu0 0
        %1381 = vmatpush.bf16.msra.mxu0 0
        %1382 = vmatpush.bf16.msra.mxu0 0
        %1383 = vmatpush.bf16.msra.mxu0 0
        %1384 = vmatpush.bf16.msra.mxu0 0
        %1385 = vmatpush.bf16.msra.mxu0 %v1364
        %1386 = vmatpush.bf16.msra.mxu0 %v1363
        %1387 = vmatmul.bf16.gmra.mxu0 %v1368
        %v1388 = vpop.f32.mrf.mxu0
        %v1389 = vadd.f32 %v1353, %v1388
        %v1390 = vpop.f32.mrf.mxu0
        %v1391 = vadd.f32 %v1353, %v1390
        %1392 = vmatmul.bf16.gmra.mxu0 %v1371
        %v1393 = vpop.f32.mrf.mxu0
        %v1394 = vadd.f32 %v1353, %v1393
        %v1395 = vpop.f32.mrf.mxu0
        %v1396 = vadd.f32 %v1353, %v1395
        %1397 = vmatmul.bf16.gmra.mxu0 %v1374
        %v1398 = vpop.f32.mrf.mxu0
        %v1399 = vadd.f32 %v1353, %v1398
        %v1400 = vpop.f32.mrf.mxu0
        %v1401 = vadd.f32 %v1353, %v1400
        %1402 = vmatmul.bf16.gmra.mxu0 %v1377
        %v1403 = vpop.f32.mrf.mxu0
        %v1404 = vadd.f32 %v1353, %v1403
        %v1405 = vpop.f32.mrf.mxu0
        %v1406 = vadd.f32 %v1353, %v1405
        %1407 = vdwg.mxu0
        %v1408 = vxor.u32 %v1389, 2147483648
        %v1409 = vxor.u32 %v1391, 2147483648
        %v1410 = vxor.u32 %v1394, 2147483648
        %v1411 = vxor.u32 %v1396, 2147483648
        %v1412 = vxor.u32 %v1399, 2147483648
        %v1413 = vxor.u32 %v1401, 2147483648
        %v1414 = vxor.u32 %v1404, 2147483648
        %v1415 = vxor.u32 %v1406, 2147483648
        %v1416 = vmul.f32 %v1408, 1.442695
        %v1417 = vpow.pop %v1416
        %v1418 = vmul.f32 %v1409, 1.442695
        %v1419 = vpow.pop %v1418
        %v1420 = vmul.f32 %v1410, 1.442695
        %v1421 = vpow.pop %v1420
        %v1422 = vmul.f32 %v1411, 1.442695
        %v1423 = vpow.pop %v1422
        %v1424 = vmul.f32 %v1412, 1.442695
        %v1425 = vpow.pop %v1424
        %v1426 = vmul.f32 %v1413, 1.442695
        %v1427 = vpow.pop %v1426
        %v1428 = vmul.f32 %v1414, 1.442695
        %v1429 = vpow.pop %v1428
        %v1430 = vmul.f32 %v1415, 1.442695
        %v1431 = vpow.pop %v1430
        %v1432 = vadd.f32 %v1417, 1.0
        %v1433 = vadd.f32 %v1419, 1.0
        %v1434 = vadd.f32 %v1421, 1.0
        %v1435 = vadd.f32 %v1423, 1.0
        %v1436 = vadd.f32 %v1425, 1.0
        %v1437 = vadd.f32 %v1427, 1.0
        %v1438 = vadd.f32 %v1429, 1.0
        %v1439 = vadd.f32 %v1431, 1.0
        %v1440 = vrcp.pop %v1432
        %v1441 = vmul.f32 %v1432, %v1440
        %v1442 = vsub.f32 1.0, %v1441
        %v1443 = vmul.f32 %v1440, %v1442
        %v1444 = vadd.f32 %v1440, %v1443
        %vm1445 = vweird.f32 %v1432
        %vm1446 = vweird.f32 %v1440
        %vm1447 = vmor %vm1445, %vm1446
        %v1448 = vsel %vm1447, %v1440, %v1444
        %v1449 = vand.u32 2147483647, %v1432
        %vm1450 = vcmp.eq.f32.partialorder %v1449, 8.507059e+37
        %v1451 = vand.u32 %v1432, 2147483648
        %v1452 = vor.u32 1.1754944e-38, %v1451
        %v1453 = vsel %vm1450, %v1452, %v1448
        %v1454 = vmul.f32 1.0, %v1453
        %v1455 = vrcp.pop %v1433
        %v1456 = vmul.f32 %v1433, %v1455
        %v1457 = vsub.f32 1.0, %v1456
        %v1458 = vmul.f32 %v1455, %v1457
        %v1459 = vadd.f32 %v1455, %v1458
        %vm1460 = vweird.f32 %v1433
        %vm1461 = vweird.f32 %v1455
        %vm1462 = vmor %vm1460, %vm1461
        %v1463 = vsel %vm1462, %v1455, %v1459
        %v1464 = vand.u32 2147483647, %v1433
        %vm1465 = vcmp.eq.f32.partialorder %v1464, 8.507059e+37
        %v1466 = vand.u32 %v1433, 2147483648
        %v1467 = vor.u32 1.1754944e-38, %v1466
        %v1468 = vsel %vm1465, %v1467, %v1463
        %v1469 = vmul.f32 1.0, %v1468
        %v1470 = vrcp.pop %v1434
        %v1471 = vmul.f32 %v1434, %v1470
        %v1472 = vsub.f32 1.0, %v1471
        %v1473 = vmul.f32 %v1470, %v1472
        %v1474 = vadd.f32 %v1470, %v1473
        %vm1475 = vweird.f32 %v1434
        %vm1476 = vweird.f32 %v1470
        %vm1477 = vmor %vm1475, %vm1476
        %v1478 = vsel %vm1477, %v1470, %v1474
        %v1479 = vand.u32 2147483647, %v1434
        %vm1480 = vcmp.eq.f32.partialorder %v1479, 8.507059e+37
        %v1481 = vand.u32 %v1434, 2147483648
        %v1482 = vor.u32 1.1754944e-38, %v1481
        %v1483 = vsel %vm1480, %v1482, %v1478
        %v1484 = vmul.f32 1.0, %v1483
        %v1485 = vrcp.pop %v1435
        %v1486 = vmul.f32 %v1435, %v1485
        %v1487 = vsub.f32 1.0, %v1486
        %v1488 = vmul.f32 %v1485, %v1487
        %v1489 = vadd.f32 %v1485, %v1488
        %vm1490 = vweird.f32 %v1435
        %vm1491 = vweird.f32 %v1485
        %vm1492 = vmor %vm1490, %vm1491
        %v1493 = vsel %vm1492, %v1485, %v1489
        %v1494 = vand.u32 2147483647, %v1435
        %vm1495 = vcmp.eq.f32.partialorder %v1494, 8.507059e+37
        %v1496 = vand.u32 %v1435, 2147483648
        %v1497 = vor.u32 1.1754944e-38, %v1496
        %v1498 = vsel %vm1495, %v1497, %v1493
        %v1499 = vmul.f32 1.0, %v1498
        %v1500 = vrcp.pop %v1436
        %v1501 = vmul.f32 %v1436, %v1500
        %v1502 = vsub.f32 1.0, %v1501
        %v1503 = vmul.f32 %v1500, %v1502
        %v1504 = vadd.f32 %v1500, %v1503
        %vm1505 = vweird.f32 %v1436
        %vm1506 = vweird.f32 %v1500
        %vm1507 = vmor %vm1505, %vm1506
        %v1508 = vsel %vm1507, %v1500, %v1504
        %v1509 = vand.u32 2147483647, %v1436
        %vm1510 = vcmp.eq.f32.partialorder %v1509, 8.507059e+37
        %v1511 = vand.u32 %v1436, 2147483648
        %v1512 = vor.u32 1.1754944e-38, %v1511
        %v1513 = vsel %vm1510, %v1512, %v1508
        %v1514 = vmul.f32 1.0, %v1513
        %v1515 = vrcp.pop %v1437
        %v1516 = vmul.f32 %v1437, %v1515
        %v1517 = vsub.f32 1.0, %v1516
        %v1518 = vmul.f32 %v1515, %v1517
        %v1519 = vadd.f32 %v1515, %v1518
        %vm1520 = vweird.f32 %v1437
        %vm1521 = vweird.f32 %v1515
        %vm1522 = vmor %vm1520, %vm1521
        %v1523 = vsel %vm1522, %v1515, %v1519
        %v1524 = vand.u32 2147483647, %v1437
        %vm1525 = vcmp.eq.f32.partialorder %v1524, 8.507059e+37
        %v1526 = vand.u32 %v1437, 2147483648
        %v1527 = vor.u32 1.1754944e-38, %v1526
        %v1528 = vsel %vm1525, %v1527, %v1523
        %v1529 = vmul.f32 1.0, %v1528
        %v1530 = vrcp.pop %v1438
        %v1531 = vmul.f32 %v1438, %v1530
        %v1532 = vsub.f32 1.0, %v1531
        %v1533 = vmul.f32 %v1530, %v1532
        %v1534 = vadd.f32 %v1530, %v1533
        %vm1535 = vweird.f32 %v1438
        %vm1536 = vweird.f32 %v1530
        %vm1537 = vmor %vm1535, %vm1536
        %v1538 = vsel %vm1537, %v1530, %v1534
        %v1539 = vand.u32 2147483647, %v1438
        %vm1540 = vcmp.eq.f32.partialorder %v1539, 8.507059e+37
        %v1541 = vand.u32 %v1438, 2147483648
        %v1542 = vor.u32 1.1754944e-38, %v1541
        %v1543 = vsel %vm1540, %v1542, %v1538
        %v1544 = vmul.f32 1.0, %v1543
        %v1545 = vrcp.pop %v1439
        %v1546 = vmul.f32 %v1439, %v1545
        %v1547 = vsub.f32 1.0, %v1546
        %v1548 = vmul.f32 %v1545, %v1547
        %v1549 = vadd.f32 %v1545, %v1548
        %vm1550 = vweird.f32 %v1439
        %vm1551 = vweird.f32 %v1545
        %vm1552 = vmor %vm1550, %vm1551
        %v1553 = vsel %vm1552, %v1545, %v1549
        %v1554 = vand.u32 2147483647, %v1439
        %vm1555 = vcmp.eq.f32.partialorder %v1554, 8.507059e+37
        %v1556 = vand.u32 %v1439, 2147483648
        %v1557 = vor.u32 1.1754944e-38, %v1556
        %v1558 = vsel %vm1555, %v1557, %v1553
        %v1559 = vmul.f32 1.0, %v1558
        %v1560 = vmul.f32 %v1389, %v1454
        %v1561 = vmul.f32 %v1391, %v1469
        %v1562 = vmul.f32 %v1394, %v1484
        %v1563 = vmul.f32 %v1396, %v1499
        %v1564 = vmul.f32 %v1399, %v1514
        %v1565 = vmul.f32 %v1401, %v1529
        %v1566 = vmul.f32 %v1404, %v1544
        %v1567 = vmul.f32 %v1406, %v1559
        %v1568 = vld [vmem:[#allocation3] sm:$0xff]
        %v1570 = vrot.slane %v924, 1
        %v1571 = vrot.slane %v924, 2
        %v1572 = vrot.slane %v924, 3
        %v1573 = vrot.slane %v924, 4
        %v1574 = vrot.slane %v924, 5
        %v1575 = vrot.slane %v924, 6
        %v1576 = vrot.slane %v924, 7
        %v1577 = vperm.slane %v924, 0
        %v1578 = vperm.slane %v1570, 0
        %v1579 = vperm.slane %v1571, 0
        %v1580 = vperm.slane %v1572, 0
        %v1581 = vperm.slane %v1573, 0
        %v1582 = vperm.slane %v1574, 0
        %v1583 = vperm.slane %v1575, 0
        %v1584 = vperm.slane %v1576, 0
        %1585 = vset.pattern.permute.xlu0 0
        %1586 = vperm.xlu0 %1585, %v1577
        %v1587 = vpop.permute.xlu0 %1586
        %1589 = vset.pattern.permute.xlu0 0
        %1590 = vperm.xlu0 %1589, %v1578
        %v1591 = vpop.permute.xlu0 %1590
        %1593 = vset.pattern.permute.xlu0 0
        %1594 = vperm.xlu0 %1593, %v1579
        %v1595 = vpop.permute.xlu0 %1594
        %1597 = vset.pattern.permute.xlu0 0
        %1598 = vperm.xlu0 %1597, %v1580
        %v1599 = vpop.permute.xlu0 %1598
        %1601 = vset.pattern.permute.xlu0 0
        %1602 = vperm.xlu0 %1601, %v1581
        %v1603 = vpop.permute.xlu0 %1602
        %1605 = vset.pattern.permute.xlu0 0
        %1606 = vperm.xlu0 %1605, %v1582
        %v1607 = vpop.permute.xlu0 %1606
        %1609 = vset.pattern.permute.xlu0 0
        %1610 = vperm.xlu0 %1609, %v1583
        %v1611 = vpop.permute.xlu0 %1610
        %1613 = vset.pattern.permute.xlu0 0
        %1614 = vperm.xlu0 %1613, %v1584
        %v1615 = vpop.permute.xlu0 %1614
        %v1617 = vmul.f32 %v1560, %v1587
        %v1618 = vmul.f32 %v1561, %v1591
        %v1619 = vmul.f32 %v1562, %v1595
        %v1620 = vmul.f32 %v1563, %v1599
        %v1621 = vmul.f32 %v1564, %v1603
        %v1622 = vmul.f32 %v1565, %v1607
        %v1623 = vmul.f32 %v1566, %v1611
        %v1624 = vmul.f32 %v1567, %v1615
        %v1625 = vsel %vm1125, %v1617, 0.0
        %v1626 = vsel %vm1125, %v1618, 0.0
        %v1627 = vadd.f32 %v1625, %v1626
        %v1628 = vsel %vm1125, %v1619, 0.0
        %v1629 = vadd.f32 %v1627, %v1628
        %v1630 = vsel %vm1125, %v1620, 0.0
        %v1631 = vadd.f32 %v1629, %v1630
        %v1632 = vsel %vm1125, %v1621, 0.0
        %v1633 = vadd.f32 %v1631, %v1632
        %v1634 = vsel %vm1125, %v1622, 0.0
        %v1635 = vadd.f32 %v1633, %v1634
        %v1636 = vsel %vm1125, %v1623, 0.0
        %v1637 = vadd.f32 %v1635, %v1636
        %v1638 = vsel %vm1125, %v1624, 0.0
        %v1639 = vadd.f32 %v1637, %v1638
        %v1640 = vadd.f32 %v1568, %v1639
        %1641 = vst.msk [vmem:[#allocation3] sm:$0xff] %vm1125, %v1640
        %v1642 = vpack.c.bf16 %v1561, %v1560
        %v1643 = vpack.c.bf16 %v1563, %v1562
        %v1644 = vpack.c.bf16 %v1565, %v1564
        %v1645 = vpack.c.bf16 %v1567, %v1566
        %v1646 = vld [vmem:[%s13] sm:$0xf]
        %v1647 = vld [vmem:[%s13 + $0x4] sm:$0xf]
        %v1648 = vld [vmem:[%s13 + $0x8] sm:$0xf]
        %v1649 = vld [vmem:[%s13 + $0xc] sm:$0xf]
        %v1650 = vld [vmem:[%s14] sm:$0x1]
        %v1652 = vperm.slane %v1650, 0
        %v1658 = vunpack.c.l.b16 %v1646
        %v1659 = vunpack.c.l.b16 %v1647
        %v1660 = vunpack.c.l.b16 %v1648
        %v1661 = vunpack.c.l.b16 %v1649
        %v1662 = vpack.c.b16 %v1659, %v1658
        %v1663 = vpack.c.b16 %v1661, %v1660
        %v1667 = vsel %vm1125, %v1642, 0
        %v1670 = vsel %vm1125, %v1643, 0
        %v1673 = vsel %vm1125, %v1644, 0
        %v1676 = vsel %vm1125, %v1645, 0
        %1678 = vmatpush.bf16.msra.mxu0 0
        %1679 = vmatpush.bf16.msra.mxu0 0
        %1680 = vmatpush.bf16.msra.mxu0 0
        %1681 = vmatpush.bf16.msra.mxu0 0
        %1682 = vmatpush.bf16.msra.mxu0 0
        %1683 = vmatpush.bf16.msra.mxu0 0
        %1684 = vmatpush.bf16.msra.mxu0 %v1663
        %1685 = vmatpush.bf16.msra.mxu0 %v1662
        %1686 = vmatmul.bf16.gmra.mxu0 %v1667
        %v1687 = vpop.f32.mrf.mxu0
        %v1688 = vadd.f32 %v1652, %v1687
        %v1689 = vpop.f32.mrf.mxu0
        %v1690 = vadd.f32 %v1652, %v1689
        %1691 = vmatmul.bf16.gmra.mxu0 %v1670
        %v1692 = vpop.f32.mrf.mxu0
        %v1693 = vadd.f32 %v1652, %v1692
        %v1694 = vpop.f32.mrf.mxu0
        %v1695 = vadd.f32 %v1652, %v1694
        %1696 = vmatmul.bf16.gmra.mxu0 %v1673
        %v1697 = vpop.f32.mrf.mxu0
        %v1698 = vadd.f32 %v1652, %v1697
        %v1699 = vpop.f32.mrf.mxu0
        %v1700 = vadd.f32 %v1652, %v1699
        %1701 = vmatmul.bf16.gmra.mxu0 %v1676
        %v1702 = vpop.f32.mrf.mxu0
        %v1703 = vadd.f32 %v1652, %v1702
        %v1704 = vpop.f32.mrf.mxu0
        %v1705 = vadd.f32 %v1652, %v1704
        %1706 = vdwg.mxu0
        %v1707 = vxor.u32 %v1688, 2147483648
        %v1708 = vxor.u32 %v1690, 2147483648
        %v1709 = vxor.u32 %v1693, 2147483648
        %v1710 = vxor.u32 %v1695, 2147483648
        %v1711 = vxor.u32 %v1698, 2147483648
        %v1712 = vxor.u32 %v1700, 2147483648
        %v1713 = vxor.u32 %v1703, 2147483648
        %v1714 = vxor.u32 %v1705, 2147483648
        %v1715 = vmul.f32 %v1707, 1.442695
        %v1716 = vpow.pop %v1715
        %v1717 = vmul.f32 %v1708, 1.442695
        %v1718 = vpow.pop %v1717
        %v1719 = vmul.f32 %v1709, 1.442695
        %v1720 = vpow.pop %v1719
        %v1721 = vmul.f32 %v1710, 1.442695
        %v1722 = vpow.pop %v1721
        %v1723 = vmul.f32 %v1711, 1.442695
        %v1724 = vpow.pop %v1723
        %v1725 = vmul.f32 %v1712, 1.442695
        %v1726 = vpow.pop %v1725
        %v1727 = vmul.f32 %v1713, 1.442695
        %v1728 = vpow.pop %v1727
        %v1729 = vmul.f32 %v1714, 1.442695
        %v1730 = vpow.pop %v1729
        %v1731 = vadd.f32 %v1716, 1.0
        %v1732 = vadd.f32 %v1718, 1.0
        %v1733 = vadd.f32 %v1720, 1.0
        %v1734 = vadd.f32 %v1722, 1.0
        %v1735 = vadd.f32 %v1724, 1.0
        %v1736 = vadd.f32 %v1726, 1.0
        %v1737 = vadd.f32 %v1728, 1.0
        %v1738 = vadd.f32 %v1730, 1.0
        %v1739 = vrcp.pop %v1731
        %v1740 = vmul.f32 %v1731, %v1739
        %v1741 = vsub.f32 1.0, %v1740
        %v1742 = vmul.f32 %v1739, %v1741
        %v1743 = vadd.f32 %v1739, %v1742
        %vm1744 = vweird.f32 %v1731
        %vm1745 = vweird.f32 %v1739
        %vm1746 = vmor %vm1744, %vm1745
        %v1747 = vsel %vm1746, %v1739, %v1743
        %v1748 = vand.u32 2147483647, %v1731
        %vm1749 = vcmp.eq.f32.partialorder %v1748, 8.507059e+37
        %v1750 = vand.u32 %v1731, 2147483648
        %v1751 = vor.u32 1.1754944e-38, %v1750
        %v1752 = vsel %vm1749, %v1751, %v1747
        %v1753 = vmul.f32 1.0, %v1752
        %v1754 = vrcp.pop %v1732
        %v1755 = vmul.f32 %v1732, %v1754
        %v1756 = vsub.f32 1.0, %v1755
        %v1757 = vmul.f32 %v1754, %v1756
        %v1758 = vadd.f32 %v1754, %v1757
        %vm1759 = vweird.f32 %v1732
        %vm1760 = vweird.f32 %v1754
        %vm1761 = vmor %vm1759, %vm1760
        %v1762 = vsel %vm1761, %v1754, %v1758
        %v1763 = vand.u32 2147483647, %v1732
        %vm1764 = vcmp.eq.f32.partialorder %v1763, 8.507059e+37
        %v1765 = vand.u32 %v1732, 2147483648
        %v1766 = vor.u32 1.1754944e-38, %v1765
        %v1767 = vsel %vm1764, %v1766, %v1762
        %v1768 = vmul.f32 1.0, %v1767
        %v1769 = vrcp.pop %v1733
        %v1770 = vmul.f32 %v1733, %v1769
        %v1771 = vsub.f32 1.0, %v1770
        %v1772 = vmul.f32 %v1769, %v1771
        %v1773 = vadd.f32 %v1769, %v1772
        %vm1774 = vweird.f32 %v1733
        %vm1775 = vweird.f32 %v1769
        %vm1776 = vmor %vm1774, %vm1775
        %v1777 = vsel %vm1776, %v1769, %v1773
        %v1778 = vand.u32 2147483647, %v1733
        %vm1779 = vcmp.eq.f32.partialorder %v1778, 8.507059e+37
        %v1780 = vand.u32 %v1733, 2147483648
        %v1781 = vor.u32 1.1754944e-38, %v1780
        %v1782 = vsel %vm1779, %v1781, %v1777
        %v1783 = vmul.f32 1.0, %v1782
        %v1784 = vrcp.pop %v1734
        %v1785 = vmul.f32 %v1734, %v1784
        %v1786 = vsub.f32 1.0, %v1785
        %v1787 = vmul.f32 %v1784, %v1786
        %v1788 = vadd.f32 %v1784, %v1787
        %vm1789 = vweird.f32 %v1734
        %vm1790 = vweird.f32 %v1784
        %vm1791 = vmor %vm1789, %vm1790
        %v1792 = vsel %vm1791, %v1784, %v1788
        %v1793 = vand.u32 2147483647, %v1734
        %vm1794 = vcmp.eq.f32.partialorder %v1793, 8.507059e+37
        %v1795 = vand.u32 %v1734, 2147483648
        %v1796 = vor.u32 1.1754944e-38, %v1795
        %v1797 = vsel %vm1794, %v1796, %v1792
        %v1798 = vmul.f32 1.0, %v1797
        %v1799 = vrcp.pop %v1735
        %v1800 = vmul.f32 %v1735, %v1799
        %v1801 = vsub.f32 1.0, %v1800
        %v1802 = vmul.f32 %v1799, %v1801
        %v1803 = vadd.f32 %v1799, %v1802
        %vm1804 = vweird.f32 %v1735
        %vm1805 = vweird.f32 %v1799
        %vm1806 = vmor %vm1804, %vm1805
        %v1807 = vsel %vm1806, %v1799, %v1803
        %v1808 = vand.u32 2147483647, %v1735
        %vm1809 = vcmp.eq.f32.partialorder %v1808, 8.507059e+37
        %v1810 = vand.u32 %v1735, 2147483648
        %v1811 = vor.u32 1.1754944e-38, %v1810
        %v1812 = vsel %vm1809, %v1811, %v1807
        %v1813 = vmul.f32 1.0, %v1812
        %v1814 = vrcp.pop %v1736
        %v1815 = vmul.f32 %v1736, %v1814
        %v1816 = vsub.f32 1.0, %v1815
        %v1817 = vmul.f32 %v1814, %v1816
        %v1818 = vadd.f32 %v1814, %v1817
        %vm1819 = vweird.f32 %v1736
        %vm1820 = vweird.f32 %v1814
        %vm1821 = vmor %vm1819, %vm1820
        %v1822 = vsel %vm1821, %v1814, %v1818
        %v1823 = vand.u32 2147483647, %v1736
        %vm1824 = vcmp.eq.f32.partialorder %v1823, 8.507059e+37
        %v1825 = vand.u32 %v1736, 2147483648
        %v1826 = vor.u32 1.1754944e-38, %v1825
        %v1827 = vsel %vm1824, %v1826, %v1822
        %v1828 = vmul.f32 1.0, %v1827
        %v1829 = vrcp.pop %v1737
        %v1830 = vmul.f32 %v1737, %v1829
        %v1831 = vsub.f32 1.0, %v1830
        %v1832 = vmul.f32 %v1829, %v1831
        %v1833 = vadd.f32 %v1829, %v1832
        %vm1834 = vweird.f32 %v1737
        %vm1835 = vweird.f32 %v1829
        %vm1836 = vmor %vm1834, %vm1835
        %v1837 = vsel %vm1836, %v1829, %v1833
        %v1838 = vand.u32 2147483647, %v1737
        %vm1839 = vcmp.eq.f32.partialorder %v1838, 8.507059e+37
        %v1840 = vand.u32 %v1737, 2147483648
        %v1841 = vor.u32 1.1754944e-38, %v1840
        %v1842 = vsel %vm1839, %v1841, %v1837
        %v1843 = vmul.f32 1.0, %v1842
        %v1844 = vrcp.pop %v1738
        %v1845 = vmul.f32 %v1738, %v1844
        %v1846 = vsub.f32 1.0, %v1845
        %v1847 = vmul.f32 %v1844, %v1846
        %v1848 = vadd.f32 %v1844, %v1847
        %vm1849 = vweird.f32 %v1738
        %vm1850 = vweird.f32 %v1844
        %vm1851 = vmor %vm1849, %vm1850
        %v1852 = vsel %vm1851, %v1844, %v1848
        %v1853 = vand.u32 2147483647, %v1738
        %vm1854 = vcmp.eq.f32.partialorder %v1853, 8.507059e+37
        %v1855 = vand.u32 %v1738, 2147483648
        %v1856 = vor.u32 1.1754944e-38, %v1855
        %v1857 = vsel %vm1854, %v1856, %v1852
        %v1858 = vmul.f32 1.0, %v1857
        %v1859 = vmul.f32 %v1688, %v1753
        %v1860 = vmul.f32 %v1690, %v1768
        %v1861 = vmul.f32 %v1693, %v1783
        %v1862 = vmul.f32 %v1695, %v1798
        %v1863 = vmul.f32 %v1698, %v1813
        %v1864 = vmul.f32 %v1700, %v1828
        %v1865 = vmul.f32 %v1703, %v1843
        %v1866 = vmul.f32 %v1705, %v1858
        %v1867 = vld [vmem:[%s15] sm:$0x1]
        %v1869 = vperm.slane %v1867, 0
        %v1871 = vmul.f32 %v1859, %v1869
        %v1872 = vmul.f32 %v1860, %v1869
        %v1873 = vmul.f32 %v1861, %v1869
        %v1874 = vmul.f32 %v1862, %v1869
        %v1875 = vmul.f32 %v1863, %v1869
        %v1876 = vmul.f32 %v1864, %v1869
        %v1877 = vmul.f32 %v1865, %v1869
        %v1878 = vmul.f32 %v1866, %v1869
        %1879 = vadd.xlane.f32.xlu0 %v1871
        %v1880 = vpop.xlane.xlu0 %1879
        %1881 = vadd.xlane.f32.xlu0 %v1872
        %v1882 = vpop.xlane.xlu0 %1881
        %1883 = vadd.xlane.f32.xlu0 %v1873
        %v1884 = vpop.xlane.xlu0 %1883
        %1885 = vadd.xlane.f32.xlu0 %v1874
        %v1886 = vpop.xlane.xlu0 %1885
        %1887 = vadd.xlane.f32.xlu0 %v1875
        %v1888 = vpop.xlane.xlu0 %1887
        %1889 = vadd.xlane.f32.xlu0 %v1876
        %v1890 = vpop.xlane.xlu0 %1889
        %1891 = vadd.xlane.f32.xlu0 %v1877
        %v1892 = vpop.xlane.xlu0 %1891
        %1893 = vadd.xlane.f32.xlu0 %v1878
        %v1894 = vpop.xlane.xlu0 %1893
        %v1895 = vld [vmem:[#allocation5] sm:$0x1]
        %s1896 = vtos %v1895
        %v1897 = vstv %s1896
        %v1898 = vadd.f32 %v1880, %v1897
        %v1899 = vadd.f32 %v1882, %v1897
        %v1900 = vadd.f32 %v1884, %v1897
        %v1901 = vadd.f32 %v1886, %v1897
        %v1902 = vadd.f32 %v1888, %v1897
        %v1903 = vadd.f32 %v1890, %v1897
        %v1904 = vadd.f32 %v1892, %v1897
        %v1905 = vadd.f32 %v1894, %v1897
        %v1906 = vrsqrt.pop %v1099
        %v1907 = vmul.f32 %v1906, %v1099
        %v1908 = vmul.f32 %v1907, %v1906
        %v1909 = vmul.f32 0.5, %v1908
        %v1910 = vsub.f32 1.5, %v1909
        %v1911 = vmul.f32 %v1906, %v1910
        %v1912 = vmul.f32 %v1099, %v1911
        %vm1913 = vcmp.eq.f32.partialorder %v1099, inf
        %v1914 = vsel %vm1913, %v1099, %v1912
        %vm1915 = vcmp.eq.f32.partialorder %v1099, 0.0
        %v1916 = vand.u32 %v1099, 2147483648
        %v1917 = vsel %vm1915, %v1916, %v1914
        %v1918 = vrsqrt.pop %v1100
        %v1919 = vmul.f32 %v1918, %v1100
        %v1920 = vmul.f32 %v1919, %v1918
        %v1921 = vmul.f32 0.5, %v1920
        %v1922 = vsub.f32 1.5, %v1921
        %v1923 = vmul.f32 %v1918, %v1922
        %v1924 = vmul.f32 %v1100, %v1923
        %vm1925 = vcmp.eq.f32.partialorder %v1100, inf
        %v1926 = vsel %vm1925, %v1100, %v1924
        %vm1927 = vcmp.eq.f32.partialorder %v1100, 0.0
        %v1928 = vand.u32 %v1100, 2147483648
        %v1929 = vsel %vm1927, %v1928, %v1926
        %v1930 = vrsqrt.pop %v1101
        %v1931 = vmul.f32 %v1930, %v1101
        %v1932 = vmul.f32 %v1931, %v1930
        %v1933 = vmul.f32 0.5, %v1932
        %v1934 = vsub.f32 1.5, %v1933
        %v1935 = vmul.f32 %v1930, %v1934
        %v1936 = vmul.f32 %v1101, %v1935
        %vm1937 = vcmp.eq.f32.partialorder %v1101, inf
        %v1938 = vsel %vm1937, %v1101, %v1936
        %vm1939 = vcmp.eq.f32.partialorder %v1101, 0.0
        %v1940 = vand.u32 %v1101, 2147483648
        %v1941 = vsel %vm1939, %v1940, %v1938
        %v1942 = vrsqrt.pop %v1102
        %v1943 = vmul.f32 %v1942, %v1102
        %v1944 = vmul.f32 %v1943, %v1942
        %v1945 = vmul.f32 0.5, %v1944
        %v1946 = vsub.f32 1.5, %v1945
        %v1947 = vmul.f32 %v1942, %v1946
        %v1948 = vmul.f32 %v1102, %v1947
        %vm1949 = vcmp.eq.f32.partialorder %v1102, inf
        %v1950 = vsel %vm1949, %v1102, %v1948
        %vm1951 = vcmp.eq.f32.partialorder %v1102, 0.0
        %v1952 = vand.u32 %v1102, 2147483648
        %v1953 = vsel %vm1951, %v1952, %v1950
        %v1954 = vrsqrt.pop %v1103
        %v1955 = vmul.f32 %v1954, %v1103
        %v1956 = vmul.f32 %v1955, %v1954
        %v1957 = vmul.f32 0.5, %v1956
        %v1958 = vsub.f32 1.5, %v1957
        %v1959 = vmul.f32 %v1954, %v1958
        %v1960 = vmul.f32 %v1103, %v1959
        %vm1961 = vcmp.eq.f32.partialorder %v1103, inf
        %v1962 = vsel %vm1961, %v1103, %v1960
        %vm1963 = vcmp.eq.f32.partialorder %v1103, 0.0
        %v1964 = vand.u32 %v1103, 2147483648
        %v1965 = vsel %vm1963, %v1964, %v1962
        %v1966 = vrsqrt.pop %v1104
        %v1967 = vmul.f32 %v1966, %v1104
        %v1968 = vmul.f32 %v1967, %v1966
        %v1969 = vmul.f32 0.5, %v1968
        %v1970 = vsub.f32 1.5, %v1969
        %v1971 = vmul.f32 %v1966, %v1970
        %v1972 = vmul.f32 %v1104, %v1971
        %vm1973 = vcmp.eq.f32.partialorder %v1104, inf
        %v1974 = vsel %vm1973, %v1104, %v1972
        %vm1975 = vcmp.eq.f32.partialorder %v1104, 0.0
        %v1976 = vand.u32 %v1104, 2147483648
        %v1977 = vsel %vm1975, %v1976, %v1974
        %v1978 = vrsqrt.pop %v1105
        %v1979 = vmul.f32 %v1978, %v1105
        %v1980 = vmul.f32 %v1979, %v1978
        %v1981 = vmul.f32 0.5, %v1980
        %v1982 = vsub.f32 1.5, %v1981
        %v1983 = vmul.f32 %v1978, %v1982
        %v1984 = vmul.f32 %v1105, %v1983
        %vm1985 = vcmp.eq.f32.partialorder %v1105, inf
        %v1986 = vsel %vm1985, %v1105, %v1984
        %vm1987 = vcmp.eq.f32.partialorder %v1105, 0.0
        %v1988 = vand.u32 %v1105, 2147483648
        %v1989 = vsel %vm1987, %v1988, %v1986
        %v1990 = vrsqrt.pop %v1106
        %v1991 = vmul.f32 %v1990, %v1106
        %v1992 = vmul.f32 %v1991, %v1990
        %v1993 = vmul.f32 0.5, %v1992
        %v1994 = vsub.f32 1.5, %v1993
        %v1995 = vmul.f32 %v1990, %v1994
        %v1996 = vmul.f32 %v1106, %v1995
        %vm1997 = vcmp.eq.f32.partialorder %v1106, inf
        %v1998 = vsel %vm1997, %v1106, %v1996
        %vm1999 = vcmp.eq.f32.partialorder %v1106, 0.0
        %v2000 = vand.u32 %v1106, 2147483648
        %v2001 = vsel %vm1999, %v2000, %v1998
        %v2002 = vadd.f32 %v1917, 1.0
        %v2003 = vadd.f32 %v1929, 1.0
        %v2004 = vadd.f32 %v1941, 1.0
        %v2005 = vadd.f32 %v1953, 1.0
        %v2006 = vadd.f32 %v1965, 1.0
        %v2007 = vadd.f32 %v1977, 1.0
        %v2008 = vadd.f32 %v1989, 1.0
        %v2009 = vadd.f32 %v2001, 1.0
        %v2010 = vrcp.pop %v2002
        %v2011 = vrcp.pop %v2003
        %v2012 = vrcp.pop %v2004
        %v2013 = vrcp.pop %v2005
        %v2014 = vrcp.pop %v2006
        %v2015 = vrcp.pop %v2007
        %v2016 = vrcp.pop %v2008
        %v2017 = vrcp.pop %v2009
        %v2018 = vmul.f32 %v1898, %v2010
        %v2019 = vmul.f32 %v1899, %v2011
        %v2020 = vmul.f32 %v1900, %v2012
        %v2021 = vmul.f32 %v1901, %v2013
        %v2022 = vmul.f32 %v1902, %v2014
        %v2023 = vmul.f32 %v1903, %v2015
        %v2024 = vmul.f32 %v1904, %v2016
        %v2025 = vmul.f32 %v1905, %v2017
        %v2026 = vsel %vm973, %v923, 1.0
        %2027 = vset.pattern.permute.xlu0 0
        %2028 = vperm.xlu0 %2027, %v924
        %v2029 = vpop.permute.xlu0 %2028
        %v2031 = vmul.f32 %v2026, %v2029
        %v2032 = vld [vmem:[#allocation4] sm:$0xff]
        %v2034 = vrot.slane %v2031, 1
        %v2035 = vrot.slane %v2031, 2
        %v2036 = vrot.slane %v2031, 3
        %v2037 = vrot.slane %v2031, 4
        %v2038 = vrot.slane %v2031, 5
        %v2039 = vrot.slane %v2031, 6
        %v2040 = vrot.slane %v2031, 7
        %2042 = vset.pattern.permute.xlu0 32
        %2043 = vperm.xlu0 %2042, %v2018
        %v2044 = vpop.permute.xlu0 %2043
        %2047 = vset.pattern.permute.xlu0 32
        %2048 = vperm.xlu0 %2047, %v2019
        %v2049 = vpop.permute.xlu0 %2048
        %2052 = vset.pattern.permute.xlu0 32
        %2053 = vperm.xlu0 %2052, %v2020
        %v2054 = vpop.permute.xlu0 %2053
        %2057 = vset.pattern.permute.xlu0 32
        %2058 = vperm.xlu0 %2057, %v2021
        %v2059 = vpop.permute.xlu0 %2058
        %2062 = vset.pattern.permute.xlu0 32
        %2063 = vperm.xlu0 %2062, %v2022
        %v2064 = vpop.permute.xlu0 %2063
        %2067 = vset.pattern.permute.xlu0 32
        %2068 = vperm.xlu0 %2067, %v2023
        %v2069 = vpop.permute.xlu0 %2068
        %2072 = vset.pattern.permute.xlu0 32
        %2073 = vperm.xlu0 %2072, %v2024
        %v2074 = vpop.permute.xlu0 %2073
        %2077 = vset.pattern.permute.xlu0 32
        %2078 = vperm.xlu0 %2077, %v2025
        %v2079 = vpop.permute.xlu0 %2078
        %v2081 = vperm.slane %v2031, 0
        %v2082 = vperm.slane %v2034, 0
        %v2083 = vperm.slane %v2035, 0
        %v2084 = vperm.slane %v2036, 0
        %v2085 = vperm.slane %v2037, 0
        %v2086 = vperm.slane %v2038, 0
        %v2087 = vperm.slane %v2039, 0
        %v2088 = vperm.slane %v2040, 0
        %v2097 = vmul.f32 %v2044, %v2081
        %v2098 = vmul.f32 %v2049, %v2082
        %v2099 = vmul.f32 %v2054, %v2083
        %v2100 = vmul.f32 %v2059, %v2084
        %v2101 = vmul.f32 %v2064, %v2085
        %v2102 = vmul.f32 %v2069, %v2086
        %v2103 = vmul.f32 %v2074, %v2087
        %v2104 = vmul.f32 %v2079, %v2088
        %vm2105 = vcmask 31744
        %v2106 = vsel %vm2105, %v2097, 0.0
        %v2107 = vsel %vm2105, %v2098, 0.0
        %v2108 = vadd.f32 %v2106, %v2107
        %v2109 = vsel %vm2105, %v2099, 0.0
        %v2110 = vadd.f32 %v2108, %v2109
        %v2111 = vsel %vm2105, %v2100, 0.0
        %v2112 = vadd.f32 %v2110, %v2111
        %v2113 = vsel %vm2105, %v2101, 0.0
        %v2114 = vadd.f32 %v2112, %v2113
        %v2115 = vsel %vm2105, %v2102, 0.0
        %v2116 = vadd.f32 %v2114, %v2115
        %v2117 = vsel %vm2105, %v2103, 0.0
        %v2118 = vadd.f32 %v2116, %v2117
        %v2119 = vsel %vm2105, %v2104, 0.0
        %v2120 = vadd.f32 %v2118, %v2119
        %v2121 = vadd.f32 %v2032, %v2120
        %2122 = vst.msk [vmem:[#allocation4] sm:$0xff] %vm2105, %v2121
        %p2123 = scmp.eq.s32.totalorder %s47, 1
        // Predicated region
        $region113: #{tpu_custom_call.1} parent=103 // pred_check
          %p2124 = pneg %p2123
        $region114: #{tpu_custom_call.1} parent=103 // pred_check_branch
          %2126 = sbr.rel (%p2124) target = $region116
        $region115: #{tpu_custom_call.1} parent=103 // pred_region
          %v2127 = vld [vmem:[%s912] sm:$0x1]
          %s2128 = vtos %v2127
          %v2129 = vld [vmem:[%s901] sm:$0xff]
          %v2130 = vld [vmem:[#allocation4] sm:$0xff]
          %2132 = vset.pattern.permute.xlu0 3
          %2133 = vperm.xlu0 %2132, %v2130
          %v2134 = vpop.permute.xlu0 %2133
          %v2136 = vmul.f32 %v2134, %v922
          %v2137 = vsub.f32 %v2136, %v2130
          %v2138 = vstv %s2128
          %v2139 = vmul.f32 %v2137, %v2138
          %2141 = vset.pattern.permute.xlu0 0
          %2142 = vperm.xlu0 %2141, %v2129
          %v2143 = vpop.permute.xlu0 %2142
          %v2145 = vmul.f32 %v2139, %v2143
          %v2146 = vadd.f32 %v922, %v2145
          %2147 = vst.msk [vmem:[%s920] sm:$0xff] %vm973, %v2146
          %v2148 = vld [vmem:[%s869] sm:$0xff]
          %v2149 = vpack.c.bf16 %v2148, %v2148
          %v2150 = vld [vmem:[#allocation3] sm:$0xff]
          %v2151 = vpack.c.bf16 %v2150, %v2150
          %v2153 = vunpack.c.l.b16 %v2151
          %v2154 = vpack.c.b16 %v2153, %v2153
          %2155 = vrot.lane.b32.xlu0 %v2154, 32
          %v2156 = vpop.permute.xlu0 %2155
          %v2159 = vsel %vm1125, %v2149, %v2156
          %v2160 = vld [vmem:[%s17] sm:$0xf]
          %v2161 = vld [vmem:[%s17 + $0x4] sm:$0xf]
          %v2162 = vld [vmem:[%s17 + $0x8] sm:$0xf]
          %v2163 = vld [vmem:[%s17 + $0xc] sm:$0xf]
          %v2164 = vld [vmem:[%s17 + $0x10] sm:$0xf]
          %v2165 = vld [vmem:[%s17 + $0x14] sm:$0xf]
          %v2166 = vld [vmem:[%s17 + $0x18] sm:$0xf]
          %v2167 = vld [vmem:[%s17 + $0x1c] sm:$0xf]
          %v2168 = vld [vmem:[%s18] sm:$0x1]
          %v2170 = vperm.slane %v2168, 0
          %v2180 = vunpack.c.l.b16 %v2160
          %v2181 = vunpack.c.l.b16 %v2161
          %v2182 = vunpack.c.l.b16 %v2162
          %v2183 = vunpack.c.l.b16 %v2163
          %v2184 = vunpack.c.l.b16 %v2164
          %v2185 = vunpack.c.l.b16 %v2165
          %v2186 = vunpack.c.l.b16 %v2166
          %v2187 = vunpack.c.l.b16 %v2167
          %v2188 = vpack.c.b16 %v2181, %v2180
          %v2189 = vpack.c.b16 %v2183, %v2182
          %v2190 = vpack.c.b16 %v2185, %v2184
          %v2191 = vpack.c.b16 %v2187, %v2186
          %vm2196 = vcmask 523264
          %v2197 = vsel %vm2196, %v2159, 0
          %2199 = vmatpush.bf16.msra.mxu0 0
          %2200 = vmatpush.bf16.msra.mxu0 0
          %2201 = vmatpush.bf16.msra.mxu0 0
          %2202 = vmatpush.bf16.msra.mxu0 0
          %2203 = vmatpush.bf16.msra.mxu0 %v2191
          %2204 = vmatpush.bf16.msra.mxu0 %v2190
          %2205 = vmatpush.bf16.msra.mxu0 %v2189
          %2206 = vmatpush.bf16.msra.mxu0 %v2188
          %2207 = vmatmul.bf16.gmra.mxu0 %v2197
          %v2208 = vpop.f32.mrf.mxu0
          %v2209 = vadd.f32 %v2170, %v2208
          %v2210 = vpop.f32.mrf.mxu0
          %2211 = vdwg.mxu0
          %v2212 = vxor.u32 %v2209, 2147483648
          %v2213 = vmul.f32 %v2212, 1.442695
          %v2214 = vpow.pop %v2213
          %v2215 = vadd.f32 %v2214, 1.0
          %v2216 = vrcp.pop %v2215
          %v2217 = vmul.f32 %v2215, %v2216
          %v2218 = vsub.f32 1.0, %v2217
          %v2219 = vmul.f32 %v2216, %v2218
          %v2220 = vadd.f32 %v2216, %v2219
          %vm2221 = vweird.f32 %v2215
          %vm2222 = vweird.f32 %v2216
          %vm2223 = vmor %vm2221, %vm2222
          %v2224 = vsel %vm2223, %v2216, %v2220
          %v2225 = vand.u32 2147483647, %v2215
          %vm2226 = vcmp.eq.f32.partialorder %v2225, 8.507059e+37
          %v2227 = vand.u32 %v2215, 2147483648
          %v2228 = vor.u32 1.1754944e-38, %v2227
          %v2229 = vsel %vm2226, %v2228, %v2224
          %v2230 = vmul.f32 1.0, %v2229
          %v2231 = vmul.f32 %v2209, %v2230
          %v2232 = vpack.c.bf16 %v2231, %v2231
          %v2233 = vld [vmem:[%s19] sm:$0xf]
          %v2234 = vld [vmem:[%s19 + $0x4] sm:$0xf]
          %v2235 = vld [vmem:[%s19 + $0x8] sm:$0xf]
          %v2236 = vld [vmem:[%s19 + $0xc] sm:$0xf]
          %v2237 = vld [vmem:[%s19 + $0x10] sm:$0xf]
          %v2238 = vld [vmem:[%s19 + $0x14] sm:$0xf]
          %v2239 = vld [vmem:[%s19 + $0x18] sm:$0xf]
          %v2240 = vld [vmem:[%s19 + $0x1c] sm:$0xf]
          %v2241 = vld [vmem:[%s20] sm:$0x1]
          %v2243 = vperm.slane %v2241, 0
          %v2253 = vunpack.c.l.b16 %v2233
          %v2254 = vunpack.c.l.b16 %v2234
          %v2255 = vunpack.c.l.b16 %v2235
          %v2256 = vunpack.c.l.b16 %v2236
          %v2257 = vunpack.c.l.b16 %v2237
          %v2258 = vunpack.c.l.b16 %v2238
          %v2259 = vunpack.c.l.b16 %v2239
          %v2260 = vunpack.c.l.b16 %v2240
          %v2261 = vpack.c.b16 %v2254, %v2253
          %v2262 = vpack.c.b16 %v2256, %v2255
          %v2263 = vpack.c.b16 %v2258, %v2257
          %v2264 = vpack.c.b16 %v2260, %v2259
          %v2270 = vsel %vm2196, %v2232, 0
          %2272 = vmatpush.bf16.msra.mxu0 0
          %2273 = vmatpush.bf16.msra.mxu0 0
          %2274 = vmatpush.bf16.msra.mxu0 0
          %2275 = vmatpush.bf16.msra.mxu0 0
          %2276 = vmatpush.bf16.msra.mxu0 %v2264
          %2277 = vmatpush.bf16.msra.mxu0 %v2263
          %2278 = vmatpush.bf16.msra.mxu0 %v2262
          %2279 = vmatpush.bf16.msra.mxu0 %v2261
          %2280 = vmatmul.bf16.gmra.mxu0 %v2270
          %v2281 = vpop.f32.mrf.mxu0
          %v2282 = vadd.f32 %v2243, %v2281
          %v2283 = vpop.f32.mrf.mxu0
          %2284 = vdwg.mxu0
          %v2285 = vmul.f32 %v2282, %v2143
          %v2286 = vadd.f32 %v2148, %v2285
          %2287 = vst.msk [vmem:[%s851] sm:$0xff] %vm1125, %v2286
        $region116: #{tpu_custom_call.1} parent=103 // pred_fallthru
          _
        %s2288 = sand.u32 %s557, 1
        %s2289 = scalar_lea.sflag [#allocation8], %s2288
        %s2290 = sand.u32 %s557, 1
        %s2291 = smul.addr %s2290, 8
        %s2292 = scalar_lea.vmem [#allocation9], %s2291
        %p2293 = scmp.lt.s32.totalorder %s45, 1
        %s2294 = scalar_select %p2293, %s45, 1
        %p2295 = scmp.lt.s32.totalorder %s46, 1
        %s2296 = scalar_select %p2295, %s46, 1
        %s2297 = smul.addr %s2294, 2
        %s2298 = sadd.s32 %s2296, %s2297
        %s2299 = smul.addr %s2298, 8
        %s2300 = scalar_lea.vmem %s22, %s2299
        // Predicated region
        $region117: #{tpu_custom_call.1} parent=103 // pred_check
          %p2301 = pneg %p567
        $region118: #{tpu_custom_call.1} parent=103 // pred_check_branch
          %2303 = sbr.rel (%p2301) target = $region120
        $region119: #{tpu_custom_call.1} parent=103 // pred_region
          %2305 = vsyncadd %s2289, 0
          %s2306 = smul.addr %s45, 2
          %s2307 = sadd.s32 %s46, %s2306
          %s2308 = smul.addr %s2307, 8
          %s2309 = scalar_lea.hbm %s21, %s2308
          %s2311 = sshll.u32 %s2292, 4
          %s2312 = int_to_ptr.vmem [resolvable:$true] %s2311
          %s2313 = sshll.u32 %s2309, 4
          %s2314 = int_to_ptr.hbm [resolvable:$true] %s2313
          %2316 = dma.vmem_to_hbm [thread:$0]  %s2312, 128, %s2314, %s2289
        $region120: #{tpu_custom_call.1} parent=103 // pred_fallthru
          _
        // Predicated region
        $region121: #{tpu_custom_call.1} parent=103 // pred_check
          %p2317 = pneg %p595
        $region122: #{tpu_custom_call.1} parent=103 // pred_check_branch
          %2319 = sbr.rel (%p2317) target = $region124
        $region123: #{tpu_custom_call.1} parent=103 // pred_region
          _
        $region124: #{tpu_custom_call.1} parent=103 // pred_fallthru
          _
      $region104: #{tpu_custom_call.1} parent=5 // pred_fallthru
        _
      %p2320 = scmp.le.s32.totalorder 2, %s35
      // Predicated region
      $region125: #{tpu_custom_call.1} parent=5 // pred_check
        %p2321 = pneg %p2320
      $region126: #{tpu_custom_call.1} parent=5 // pred_check_branch
        %2323 = sbr.rel (%p2321) target = $region128
      $region127: #{tpu_custom_call.1} parent=5 // pred_region
        %s2324 = ssub.s32 %s35, 2
        // Predicated region
        $region129: #{tpu_custom_call.1} parent=127 // pred_check
          %p2325 = pneg %p573
        $region130: #{tpu_custom_call.1} parent=127 // pred_check_branch
          %2327 = sbr.rel (%p2325) target = $region132
        $region131: #{tpu_custom_call.1} parent=127 // pred_region
          %s2328 = sand.u32 %s558, 1
          %s2329 = scalar_lea.sflag [#allocation8], %s2328
          %s2330 = sand.u32 %s558, 1
          %s2331 = smul.addr %s2330, 8
          %s2332 = scalar_lea.vmem [#allocation9], %s2331
          %2334 = dma.done %s2329, 128
        $region132: #{tpu_custom_call.1} parent=127 // pred_fallthru
          _
        // Predicated region
        $region133: #{tpu_custom_call.1} parent=127 // pred_check
          %p2335 = pneg %p601
        $region134: #{tpu_custom_call.1} parent=127 // pred_check_branch
          %2337 = sbr.rel (%p2335) target = $region136
        $region135: #{tpu_custom_call.1} parent=127 // pred_region
          %p2338 = scmp.lt.s32.totalorder %s48, 1
          %s2339 = scalar_select %p2338, %s48, 1
          %p2340 = scmp.lt.s32.totalorder %s49, 1
          %s2341 = scalar_select %p2340, %s49, 1
          %s2342 = smul.addr %s2339, 2
          %s2343 = sadd.s32 %s2341, %s2342
          %s2344 = smul.addr %s2343, 8
          %s2345 = scalar_lea.vmem %s22, %s2344
        $region136: #{tpu_custom_call.1} parent=127 // pred_fallthru
          _
      $region128: #{tpu_custom_call.1} parent=5 // pred_fallthru
        _
    $region6: #{tpu_custom_call.1} parent=1 // loop_footer
      %s39 = sadd.s32 1, %s35
    $region7: #{tpu_custom_call.1} parent=1 // loop_footer_branch
      %34 = sbr.rel target = $region3
    $region8: #{tpu_custom_call.1} parent=1 // loop_exit
      _
    %2346 = vsyncpa [#allocation7], 1
    %s2347 = scalar_lea.sflag [#allocation7], 1
    %2348 = vsyncpa %s2347, 1
    %2349 = vsyncpa [#allocation8], 1
    %s2350 = scalar_lea.sflag [#allocation8], 1
    %2351 = vsyncpa %s2350, 1

</llo_original>
